<compile_context>
chip_gen: v7x
topology: tpu7x:2x2x1
jax: 0.10.0
libtpu: 0.0.40
codegen_flags: <defaults>
</compile_context>

<pallas_src>
import functools

import jax
import jax.numpy as jnp
from jax import lax
from jax.experimental import pallas as pl
from jax.experimental.pallas import tpu as pltpu


def _mha_kernel(num_heads, dim_head, need_weights, mxu_dtype,
                q_ref, k_ref, v_ref, m_ref,
                wq_ref, bq_ref, wk_ref, bk_ref, wv_ref, bv_ref,
                wo_ref, bo_ref,
                *outs_and_scratch):
    """One (batch n, query-tile l) grid step; all heads handled inside."""
    if need_weights:
        ctx_ref, wgt_ref, k_sc, v_sc, ctx_sc = outs_and_scratch
    else:
        ctx_ref, k_sc, v_sc, ctx_sc = outs_and_scratch
        wgt_ref = None

    # ---- K/V projection: once per batch element (l == 0), into bf16 scratch.
    @pl.when(pl.program_id(1) == 0)
    def _project_kv():
        x_k = k_ref[0].astype(mxu_dtype)                 # (S, Ek)
        x_v = v_ref[0].astype(mxu_dtype)                 # (S, Ev)
        k = jnp.dot(x_k, wk_ref[...],
                    preferred_element_type=jnp.float32) + bk_ref[...]   # (S, E) f32
        v = jnp.dot(x_v, wv_ref[...],
                    preferred_element_type=jnp.float32) + bv_ref[...]   # (S, E) f32
        k_sc[...] = k.astype(mxu_dtype)
        v_sc[...] = v.astype(mxu_dtype)

    # ---- Q projection for this query tile (scale already folded into wq/bq).
    x_q = q_ref[0].astype(mxu_dtype)                     # (Lb, E)
    q = jnp.dot(x_q, wq_ref[...],
                preferred_element_type=jnp.float32) + bq_ref[...]       # (Lb, E) f32
    q = q.astype(mxu_dtype)

    k_all = k_sc[...]                                    # (S, E) bf16
    v_all = v_sc[...]                                    # (S, E) bf16
    lb = q.shape[0]
    s_len = k_all.shape[0]

    # Hoisted mask broadcast (emitted once, not once per head).
    mask_b = jnp.broadcast_to(m_ref[0], (lb, s_len))     # (Lb, S) f32

    # ---- per-head attention (unrolled; heads share resident K/V scratch) ---
    # TODO(synk): with dim_head << 128 the score/ctx matmuls use only
    # dh/128 (v5e) or dh/256 (v6e/v7x) of the MXU; fusing head pairs / padding
    # dh would raise utilization if this path ever dominates.
    for h in range(num_heads):
        sl = slice(h * dim_head, (h + 1) * dim_head)
        q_h = q[:, sl]                                   # (Lb, dh) bf16
        k_h = k_all[:, sl]                               # (S, dh)  bf16
        v_h = v_all[:, sl]                               # (S, dh)  bf16

        # q_h @ k_h^T without materializing a transpose of k_h.
        scores = lax.dot_general(
            q_h, k_h, dimension_numbers=(((1,), (1,)), ((), ())),
            preferred_element_type=jnp.float32)          # (Lb, S) f32
        scores = scores + mask_b

        s_max = jnp.max(scores, axis=-1, keepdims=True)
        e = jnp.exp(scores - s_max)                      # (Lb, S) f32
        denom = jnp.sum(e, axis=-1, keepdims=True)       # (Lb, 1) f32

        # ctx: scale AFTER the matmul -> (Lb, dh) multiply, not (Lb, S).
        ctx_h = jnp.dot(e.astype(mxu_dtype), v_h,
                        preferred_element_type=jnp.float32)              # (Lb, dh)
        ctx_sc[:, sl] = ctx_h * pl.reciprocal(denom, approx=True)

        if need_weights:
            # Exact normalize for the returned weights (parity with PyTorch).
            wgt_ref[0, h] = (e / denom).astype(wgt_ref.dtype)

    # ---- single full-width output projection from the ctx scratch ----------
    out = jnp.dot(ctx_sc[...].astype(mxu_dtype), wo_ref[...],
                  preferred_element_type=jnp.float32) + bo_ref[...]
    ctx_ref[...] = out[None].astype(ctx_ref.dtype)


def _vmem_budget_and_block_cap():
    """Generation-aware VMEM clamp and max query-tile size."""
    try:
        info = pltpu.get_tpu_info()
        vmem_phys = int(getattr(info, "vmem_capacity_bytes", 0)) or 64 * 1024 * 1024
    except Exception:
        vmem_phys = 64 * 1024 * 1024                     # conservative (v7x-like)
    if vmem_phys <= 96 * 1024 * 1024:                    # v7x: 64 MiB / TensorCore
        return 48 * 1024 * 1024, 256
    return 100 * 1024 * 1024, 512                        # v5e / v6e: 128 MiB


def _pick_block_l(L, cap):
    """Largest multiple-of-8 divisor of L <= cap, else the full L."""
    if L <= cap:
        return L
    for cand in range(cap, 7, -1):
        if L % cand == 0 and cand % 8 == 0:
            return cand
    return L


def multi_head_attention(query, key, value, params, num_heads,
                         mask=None, block_l=None, mxu_dtype=jnp.bfloat16,
                         need_weights=True, weights_dtype=jnp.float32):
    """Pallas MultiHeadAttention forward.

    query: (N, L, E); key: (N, S, Ek); value: (N, S, Ev)
    params: PyTorch-convention Linear weights (out, in) and biases.
    mask:  optional bool (N, S), True = masked out (key-padding mask).
    Returns (context (N, L, E), weights (N, H, L, S)) or just context if
    need_weights=False.
    """
    N, L, E = query.shape
    _, S, Ek = key.shape
    _, _, Ev = value.shape
    H = num_heads
    assert E % H == 0, "dim must be divisible by num_heads"
    dh = E // H
    scale = dh ** -0.5

    vmem_budget, block_cap = _vmem_budget_and_block_cap()
    if block_l is None:
        block_l = _pick_block_l(L, block_cap)
    assert L % block_l == 0

    # ---- glue: transpose to (in, out), fold q-scale, cast weights to bf16 ---
    wq = (params["wq"].T * scale).astype(mxu_dtype)      # (E,  E)
    wk = params["wk"].T.astype(mxu_dtype)                # (Ek, E)
    wv = params["wv"].T.astype(mxu_dtype)                # (Ev, E)
    wo = params["wo"].T.astype(mxu_dtype)                # (E,  E)
    bq = (params["bq"] * scale).reshape(1, E).astype(jnp.float32)
    bk = params["bk"].reshape(1, E).astype(jnp.float32)
    bv = params["bv"].reshape(1, E).astype(jnp.float32)
    bo = params["bo"].reshape(1, E).astype(jnp.float32)

    if mask is None:
        add_mask = jnp.zeros((N, 1, S), jnp.float32)
    else:
        # Large finite negative (not -inf) so a fully-masked row cannot NaN.
        # TODO(synk): PyTorch uses -inf and yields NaN rows when every key is
        # masked; here such rows become uniform 1/S instead.
        add_mask = jnp.where(mask, -1e30, 0.0).astype(jnp.float32).reshape(N, 1, S)

    n_lb = L // block_l
    grid = (N, n_lb)

    in_specs = [
        pl.BlockSpec((1, block_l, E),  lambda n, l: (n, l, 0)),   # query tile
        pl.BlockSpec((1, S, Ek),       lambda n, l: (n, 0, 0)),   # key (per-batch)
        pl.BlockSpec((1, S, Ev),       lambda n, l: (n, 0, 0)),   # value (per-batch)
        pl.BlockSpec((1, 1, S),        lambda n, l: (n, 0, 0)),   # additive mask
        pl.BlockSpec((E, E),           lambda n, l: (0, 0)),      # Wq^T (scaled, bf16)
        pl.BlockSpec((1, E),           lambda n, l: (0, 0)),      # bq (scaled, f32)
        pl.BlockSpec((Ek, E),          lambda n, l: (0, 0)),      # Wk^T
        pl.BlockSpec((1, E),           lambda n, l: (0, 0)),      # bk
        pl.BlockSpec((Ev, E),          lambda n, l: (0, 0)),      # Wv^T
        pl.BlockSpec((1, E),           lambda n, l: (0, 0)),      # bv
        pl.BlockSpec((E, E),           lambda n, l: (0, 0)),      # Wo^T
        pl.BlockSpec((1, E),           lambda n, l: (0, 0)),      # bo
    ]

    out_specs = [pl.BlockSpec((1, block_l, E), lambda n, l: (n, l, 0))]
    out_shape = [jax.ShapeDtypeStruct((N, L, E), jnp.float32)]
    if need_weights:
        out_specs.append(pl.BlockSpec((1, H, block_l, S), lambda n, l: (n, 0, l, 0)))
        out_shape.append(jax.ShapeDtypeStruct((N, H, L, S), weights_dtype))

    scratch_shapes = [
        pltpu.VMEM((S, E), mxu_dtype),        # projected K (per batch element)
        pltpu.VMEM((S, E), mxu_dtype),        # projected V
        pltpu.VMEM((block_l, E), jnp.float32),  # per-head ctx accumulator
    ]

    # VMEM estimate: double-buffered activation tiles + resident bf16 weights
    # + outputs + scratch + softmax temporaries, with headroom; clamped to a
    # generation-aware budget (48 MiB on v7x, ~100 MiB on v5e/v6e).
    f32b, wb = 4, jnp.dtype(mxu_dtype).itemsize
    wgt_bytes = (2 * H * block_l * S * jnp.dtype(weights_dtype).itemsize
                 if need_weights else 0)
    est = (
        2 * f32b * (block_l * E + S * Ek + S * Ev + S)        # inputs (dbl-buf)
        + 2 * wb * (E * E + Ek * E + Ev * E + E * E)          # bf16 weights (dbl-buf)
        + 2 * f32b * 4 * E                                    # biases
        + 2 * f32b * block_l * E                              # ctx out (dbl-buf)
        + wgt_bytes                                           # weights out (dbl-buf)
        + 2 * wb * S * E + f32b * block_l * E                 # scratch
        + 4 * f32b * block_l * S                              # softmax temporaries
    )
    vmem_limit = int(min(max(2 * est, 16 * 1024 * 1024), vmem_budget))

    fn = pl.pallas_call(
        functools.partial(_mha_kernel, H, dh, need_weights, mxu_dtype),
        out_shape=tuple(out_shape),
        grid_spec=pltpu.PrefetchScalarGridSpec(
            num_scalar_prefetch=0,
            grid=grid,
            in_specs=in_specs,
            out_specs=out_specs,
            scratch_shapes=scratch_shapes,
        ),
        compiler_params=pltpu.CompilerParams(
            # l must be "arbitrary": the K/V scratch carries state across it.
            dimension_semantics=("parallel", "arbitrary"),
            vmem_limit_bytes=vmem_limit),
    )
    outs = fn(query, key, value, add_mask, wq, bq, wk, bk, wv, bv, wo, bo)
    if need_weights:
        return outs[0], outs[1]
    return outs[0]


def _reference(query, key, value, params, num_heads, mask=None):
    """Plain-JAX reference mirroring the PyTorch forward."""
    N, L, E = query.shape
    _, S, _ = key.shape
    H, dh = num_heads, E // num_heads
    scale = dh ** -0.5
    hi = lax.Precision.HIGHEST

    def lin(x, w, b):
        return jnp.einsum("nse,oe->nso", x, w, precision=hi) + b

    q = lin(query, params["wq"], params["bq"]).reshape(N, L, H, dh).transpose(0, 2, 1, 3)
    k = lin(key,   params["wk"], params["bk"]).reshape(N, S, H, dh).transpose(0, 2, 1, 3)
    v = lin(value, params["wv"], params["bv"]).reshape(N, S, H, dh).transpose(0, 2, 1, 3)
    scores = jnp.einsum("nhld,nhsd->nhls", q * scale, k, precision=hi)
    if mask is not None:
        scores = scores + jnp.where(mask, -1e30, 0.0).reshape(N, 1, 1, S)
    w = jax.nn.softmax(scores, axis=-1)
    ctx = jnp.einsum("nhls,nhsd->nhld", w, v, precision=hi)
    ctx = ctx.transpose(0, 2, 1, 3).reshape(N, L, E)
    ctx = jnp.einsum("nle,oe->nlo", ctx, params["wo"], precision=hi) + params["bo"]
    return ctx, w


if __name__ == "__main__":
    # Small, module-consistent shapes: dim=32, num_heads=4 -> dim_head=8.
    N, L, S, E, H = 2, 8, 8, 32, 4

    key0 = jax.random.PRNGKey(0)
    ks = jax.random.split(key0, 12)

    def xavier(k, out_f, in_f):
        bound = (6.0 / (in_f + out_f)) ** 0.5
        return jax.random.uniform(k, (out_f, in_f), jnp.float32, -bound, bound)

    params = {
        "wq": xavier(ks[0], E, E), "bq": 0.01 * jax.random.normal(ks[4], (E,), jnp.float32),
        "wk": xavier(ks[1], E, E), "bk": 0.01 * jax.random.normal(ks[5], (E,), jnp.float32),
        "wv": xavier(ks[2], E, E), "bv": 0.01 * jax.random.normal(ks[6], (E,), jnp.float32),
        "wo": xavier(ks[3], E, E), "bo": 0.01 * jax.random.normal(ks[7], (E,), jnp.float32),
    }

    query = jax.random.normal(ks[8], (N, L, E), jnp.float32)
    key_in = jax.random.normal(ks[9], (N, S, E), jnp.float32)
    value = jax.random.normal(ks[10], (N, S, E), jnp.float32)

    # --- no mask -------------------------------------------------------------
    ctx, weights = multi_head_attention(query, key_in, value, params, H, mask=None)
    jax.block_until_ready((ctx, weights))
    ctx_ref, w_ref = _reference(query, key_in, value, params, H, mask=None)
    assert ctx.shape == (N, L, E) and weights.shape == (N, H, L, S)
    # bf16 MXU operands / f32 accumulation -> slightly looser tolerance.
    assert jnp.allclose(ctx, ctx_ref, atol=2e-2, rtol=2e-2)
    assert jnp.allclose(weights, w_ref, atol=2e-2, rtol=2e-2)

    # --- key-padding mask (last two keys masked per batch) --------------------
    mask = jnp.zeros((N, S), bool).at[:, -2:].set(True)
    ctx_m, weights_m = multi_head_attention(query, key_in, value, params, H, mask=mask)
    jax.block_until_ready((ctx_m, weights_m))
    ctx_mr, w_mr = _reference(query, key_in, value, params, H, mask=mask)
    assert jnp.allclose(ctx_m, ctx_mr, atol=2e-2, rtol=2e-2)
    assert jnp.allclose(weights_m, w_mr, atol=2e-2, rtol=2e-2)
    assert jnp.allclose(weights_m[..., -2:], 0.0, atol=1e-6)

    # TODO(synk): dropout on attention weights is identity (p=0.0 / eval mode);
    # a training-mode dropout would use pltpu.prng_seed + prng_random_bits.
    print("KERNEL_OK")
</pallas_src>

<mosaic_0001>
module attributes {stable_mosaic.version = 11 : i64} {
  func.func @_mha_kernel(%arg0: i32, %arg1: i32, %arg2: memref<1x8x32xf32, #tpu.memory_space<vmem>>, %arg3: memref<1x8x32xf32, #tpu.memory_space<vmem>>, %arg4: memref<1x8x32xf32, #tpu.memory_space<vmem>>, %arg5: memref<1x1x8xf32, #tpu.memory_space<vmem>>, %arg6: memref<32x32xbf16, #tpu.memory_space<vmem>>, %arg7: memref<1x32xf32, #tpu.memory_space<vmem>>, %arg8: memref<32x32xbf16, #tpu.memory_space<vmem>>, %arg9: memref<1x32xf32, #tpu.memory_space<vmem>>, %arg10: memref<32x32xbf16, #tpu.memory_space<vmem>>, %arg11: memref<1x32xf32, #tpu.memory_space<vmem>>, %arg12: memref<32x32xbf16, #tpu.memory_space<vmem>>, %arg13: memref<1x32xf32, #tpu.memory_space<vmem>>, %arg14: memref<1x8x32xf32, #tpu.memory_space<vmem>>, %arg15: memref<1x4x8x8xf32, #tpu.memory_space<vmem>>, %arg16: memref<8x32xbf16, #tpu.memory_space<vmem>>, %arg17: memref<8x32xbf16, #tpu.memory_space<vmem>>, %arg18: memref<8x32xf32, #tpu.memory_space<vmem>>) attributes {dimension_semantics = [#tpu.dimension_semantics<parallel>, #tpu.dimension_semantics<arbitrary>], iteration_bounds = array<i64: 2, 1>, scalar_prefetch = 0 : i64, scratch_operands = 3 : i64, tpu.core_type = #tpu.core_type<tc>, window_params = [{transform_indices = @transform_0, window_bounds = array<i64: 1, 8, 32>}, {transform_indices = @transform_1, window_bounds = array<i64: 1, 8, 32>}, {transform_indices = @transform_2, window_bounds = array<i64: 1, 8, 32>}, {transform_indices = @transform_3, window_bounds = array<i64: 1, 1, 8>}, {pipeline_mode = #tpu.pipeline_mode<synchronous>, transform_indices = @transform_4, window_bounds = array<i64: 32, 32>}, {pipeline_mode = #tpu.pipeline_mode<synchronous>, transform_indices = @transform_5, window_bounds = array<i64: 1, 32>}, {pipeline_mode = #tpu.pipeline_mode<synchronous>, transform_indices = @transform_6, window_bounds = array<i64: 32, 32>}, {pipeline_mode = #tpu.pipeline_mode<synchronous>, transform_indices = @transform_7, window_bounds = array<i64: 1, 32>}, {pipeline_mode = #tpu.pipeline_mode<synchronous>, transform_indices = @transform_8, window_bounds = array<i64: 32, 32>}, {pipeline_mode = #tpu.pipeline_mode<synchronous>, transform_indices = @transform_9, window_bounds = array<i64: 1, 32>}, {pipeline_mode = #tpu.pipeline_mode<synchronous>, transform_indices = @transform_10, window_bounds = array<i64: 32, 32>}, {pipeline_mode = #tpu.pipeline_mode<synchronous>, transform_indices = @transform_11, window_bounds = array<i64: 1, 32>}, {transform_indices = @transform_12, window_bounds = array<i64: 1, 8, 32>}, {transform_indices = @transform_13, window_bounds = array<i64: 1, 4, 8, 8>}]} {
    %c0_i32 = arith.constant 0 : i32
    %0 = arith.cmpi eq, %arg1, %c0_i32 : i32
    %1 = arith.extui %0 : i1 to i32
    %c0_i32_0 = arith.constant 0 : i32
    %2 = arith.cmpi ne, %1, %c0_i32_0 : i32
    scf.if %2 {
      %c0_58 = arith.constant 0 : index
      %c0_59 = arith.constant 0 : index
      %c0_60 = arith.constant 0 : index
      %119 = vector.load %arg3[%c0_58, %c0_59, %c0_60] : memref<1x8x32xf32, #tpu.memory_space<vmem>>, vector<1x8x32xf32>
      %120 = vector.shape_cast %119 : vector<1x8x32xf32> to vector<8x32xf32>
      %121 = arith.truncf %120 : vector<8x32xf32> to vector<8x32xbf16>
      %c0_61 = arith.constant 0 : index
      %c0_62 = arith.constant 0 : index
      %c0_63 = arith.constant 0 : index
      %122 = vector.load %arg4[%c0_61, %c0_62, %c0_63] : memref<1x8x32xf32, #tpu.memory_space<vmem>>, vector<1x8x32xf32>
      %123 = vector.shape_cast %122 : vector<1x8x32xf32> to vector<8x32xf32>
      %124 = arith.truncf %123 : vector<8x32xf32> to vector<8x32xbf16>
      %c0_64 = arith.constant 0 : index
      %c0_65 = arith.constant 0 : index
      %125 = vector.load %arg8[%c0_64, %c0_65] : memref<32x32xbf16, #tpu.memory_space<vmem>>, vector<32x32xbf16>
      %cst_66 = arith.constant dense<0.000000e+00> : vector<8x32xf32>
      %126 = tpu.matmul %121, %125, %cst_66 {dimension_numbers = #tpu.dot_dimension_numbers<[1], [0], [0], [1], [0, 0, 1, 1], [], []>} : vector<8x32xbf16>, vector<32x32xbf16>, vector<8x32xf32> -> vector<8x32xf32>
      %c0_67 = arith.constant 0 : index
      %c0_68 = arith.constant 0 : index
      %127 = vector.load %arg9[%c0_67, %c0_68] : memref<1x32xf32, #tpu.memory_space<vmem>>, vector<1x32xf32>
      %128 = vector.broadcast %127 : vector<1x32xf32> to vector<8x32xf32>
      %129 = arith.addf %126, %128 : vector<8x32xf32>
      %c0_69 = arith.constant 0 : index
      %c0_70 = arith.constant 0 : index
      %130 = vector.load %arg10[%c0_69, %c0_70] : memref<32x32xbf16, #tpu.memory_space<vmem>>, vector<32x32xbf16>
      %cst_71 = arith.constant dense<0.000000e+00> : vector<8x32xf32>
      %131 = tpu.matmul %124, %130, %cst_71 {dimension_numbers = #tpu.dot_dimension_numbers<[1], [0], [0], [1], [0, 0, 1, 1], [], []>} : vector<8x32xbf16>, vector<32x32xbf16>, vector<8x32xf32> -> vector<8x32xf32>
      %c0_72 = arith.constant 0 : index
      %c0_73 = arith.constant 0 : index
      %132 = vector.load %arg11[%c0_72, %c0_73] : memref<1x32xf32, #tpu.memory_space<vmem>>, vector<1x32xf32>
      %133 = vector.broadcast %132 : vector<1x32xf32> to vector<8x32xf32>
      %134 = arith.addf %131, %133 : vector<8x32xf32>
      %135 = arith.truncf %129 : vector<8x32xf32> to vector<8x32xbf16>
      %c0_74 = arith.constant 0 : index
      %c0_75 = arith.constant 0 : index
      %136 = vector.load %arg16[%c0_74, %c0_75] : memref<8x32xbf16, #tpu.memory_space<vmem>>, vector<8x32xbf16>
      tpu.vector_store %arg16[%c0_74, %c0_75], %135 {strides = array<i32>} : memref<8x32xbf16, #tpu.memory_space<vmem>>, vector<8x32xbf16>,
      %137 = arith.truncf %134 : vector<8x32xf32> to vector<8x32xbf16>
      %c0_76 = arith.constant 0 : index
      %c0_77 = arith.constant 0 : index
      %138 = vector.load %arg17[%c0_76, %c0_77] : memref<8x32xbf16, #tpu.memory_space<vmem>>, vector<8x32xbf16>
      tpu.vector_store %arg17[%c0_76, %c0_77], %137 {strides = array<i32>} : memref<8x32xbf16, #tpu.memory_space<vmem>>, vector<8x32xbf16>,
    } else {
    }
    %c0 = arith.constant 0 : index
    %c0_1 = arith.constant 0 : index
    %c0_2 = arith.constant 0 : index
    %3 = vector.load %arg2[%c0, %c0_1, %c0_2] : memref<1x8x32xf32, #tpu.memory_space<vmem>>, vector<1x8x32xf32>
    %4 = vector.shape_cast %3 : vector<1x8x32xf32> to vector<8x32xf32>
    %5 = arith.truncf %4 : vector<8x32xf32> to vector<8x32xbf16>
    %c0_3 = arith.constant 0 : index
    %c0_4 = arith.constant 0 : index
    %6 = vector.load %arg6[%c0_3, %c0_4] : memref<32x32xbf16, #tpu.memory_space<vmem>>, vector<32x32xbf16>
    %cst = arith.constant dense<0.000000e+00> : vector<8x32xf32>
    %7 = tpu.matmul %5, %6, %cst {dimension_numbers = #tpu.dot_dimension_numbers<[1], [0], [0], [1], [0, 0, 1, 1], [], []>} : vector<8x32xbf16>, vector<32x32xbf16>, vector<8x32xf32> -> vector<8x32xf32>
    %c0_5 = arith.constant 0 : index
    %c0_6 = arith.constant 0 : index
    %8 = vector.load %arg7[%c0_5, %c0_6] : memref<1x32xf32, #tpu.memory_space<vmem>>, vector<1x32xf32>
    %9 = vector.broadcast %8 : vector<1x32xf32> to vector<8x32xf32>
    %10 = arith.addf %7, %9 : vector<8x32xf32>
    %11 = arith.truncf %10 : vector<8x32xf32> to vector<8x32xbf16>
    %c0_7 = arith.constant 0 : index
    %c0_8 = arith.constant 0 : index
    %12 = vector.load %arg16[%c0_7, %c0_8] : memref<8x32xbf16, #tpu.memory_space<vmem>>, vector<8x32xbf16>
    %c0_9 = arith.constant 0 : index
    %c0_10 = arith.constant 0 : index
    %13 = vector.load %arg17[%c0_9, %c0_10] : memref<8x32xbf16, #tpu.memory_space<vmem>>, vector<8x32xbf16>
    %c0_11 = arith.constant 0 : index
    %c0_12 = arith.constant 0 : index
    %c0_13 = arith.constant 0 : index
    %14 = vector.load %arg5[%c0_11, %c0_12, %c0_13] : memref<1x1x8xf32, #tpu.memory_space<vmem>>, vector<1x1x8xf32>
    %15 = vector.shape_cast %14 : vector<1x1x8xf32> to vector<1x8xf32>
    %16 = vector.shape_cast %15 : vector<1x8xf32> to vector<1x8xf32>
    %17 = vector.broadcast %16 : vector<1x8xf32> to vector<8x8xf32>
    %18 = vector.extract_strided_slice %11 {offsets = [0, 0], sizes = [8, 8], strides = [1, 1]} : vector<8x32xbf16> to vector<8x8xbf16>
    %19 = vector.extract_strided_slice %12 {offsets = [0, 0], sizes = [8, 8], strides = [1, 1]} : vector<8x32xbf16> to vector<8x8xbf16>
    %20 = vector.extract_strided_slice %13 {offsets = [0, 0], sizes = [8, 8], strides = [1, 1]} : vector<8x32xbf16> to vector<8x8xbf16>
    %cst_14 = arith.constant dense<0.000000e+00> : vector<8x8xf32>
    %21 = tpu.matmul %18, %19, %cst_14 {dimension_numbers = #tpu.dot_dimension_numbers<[1], [1], [0], [0], [0, 0, 1, 0], [], []>} : vector<8x8xbf16>, vector<8x8xbf16>, vector<8x8xf32> -> vector<8x8xf32>
    %22 = arith.addf %21, %17 : vector<8x8xf32>
    %cst_15 = arith.constant dense<0xFF800000> : vector<8xf32>
    %23 = vector.multi_reduction <maximumf>, %22, %cst_15 [1] : vector<8x8xf32> to vector<8xf32>
    %24 = vector.shape_cast %23 : vector<8xf32> to vector<8x1xf32>
    %25 = vector.broadcast %24 : vector<8x1xf32> to vector<8x8xf32>
    %26 = arith.subf %22, %25 : vector<8x8xf32>
    %27 = math.exp %26 : vector<8x8xf32>
    %cst_16 = arith.constant dense<0.000000e+00> : vector<8xf32>
    %28 = vector.multi_reduction <add>, %27, %cst_16 [1] : vector<8x8xf32> to vector<8xf32>
    %29 = vector.shape_cast %28 : vector<8xf32> to vector<8x1xf32>
    %30 = arith.truncf %27 : vector<8x8xf32> to vector<8x8xbf16>
    %cst_17 = arith.constant dense<0.000000e+00> : vector<8x8xf32>
    %31 = tpu.matmul %30, %20, %cst_17 {dimension_numbers = #tpu.dot_dimension_numbers<[1], [0], [0], [1], [0, 0, 1, 1], [], []>} : vector<8x8xbf16>, vector<8x8xbf16>, vector<8x8xf32> -> vector<8x8xf32>
    %32 = tpu.reciprocal %29 {approx = true} : vector<8x1xf32> -> vector<8x1xf32>
    %33 = vector.broadcast %32 : vector<8x1xf32> to vector<8x8xf32>
    %34 = arith.mulf %31, %33 : vector<8x8xf32>
    %c0_18 = arith.constant 0 : index
    %c0_19 = arith.constant 0 : index
    %35 = vector.load %arg18[%c0_18, %c0_19] : memref<8x32xf32, #tpu.memory_space<vmem>>, vector<8x8xf32>
    tpu.vector_store %arg18[%c0_18, %c0_19], %34 {strides = array<i32>} : memref<8x32xf32, #tpu.memory_space<vmem>>, vector<8x8xf32>,
    %36 = vector.broadcast %29 : vector<8x1xf32> to vector<8x8xf32>
    %37 = arith.divf %27, %36 : vector<8x8xf32>
    %c0_20 = arith.constant 0 : index
    %c0_21 = arith.constant 0 : index
    %c0_22 = arith.constant 0 : index
    %c0_23 = arith.constant 0 : index
    %38 = vector.load %arg15[%c0_20, %c0_21, %c0_22, %c0_23] : memref<1x4x8x8xf32, #tpu.memory_space<vmem>>, vector<1x1x8x8xf32>
    %39 = vector.shape_cast %38 : vector<1x1x8x8xf32> to vector<8x8xf32>
    %40 = vector.shape_cast %37 : vector<8x8xf32> to vector<1x1x8x8xf32>
    tpu.vector_store %arg15[%c0_20, %c0_21, %c0_22, %c0_23], %40 {strides = array<i32>} : memref<1x4x8x8xf32, #tpu.memory_space<vmem>>, vector<1x1x8x8xf32>,
    %41 = vector.extract_strided_slice %11 {offsets = [0, 8], sizes = [8, 8], strides = [1, 1]} : vector<8x32xbf16> to vector<8x8xbf16>
    %42 = vector.extract_strided_slice %12 {offsets = [0, 8], sizes = [8, 8], strides = [1, 1]} : vector<8x32xbf16> to vector<8x8xbf16>
    %43 = vector.extract_strided_slice %13 {offsets = [0, 8], sizes = [8, 8], strides = [1, 1]} : vector<8x32xbf16> to vector<8x8xbf16>
    %cst_24 = arith.constant dense<0.000000e+00> : vector<8x8xf32>
    %44 = tpu.matmul %41, %42, %cst_24 {dimension_numbers = #tpu.dot_dimension_numbers<[1], [1], [0], [0], [0, 0, 1, 0], [], []>} : vector<8x8xbf16>, vector<8x8xbf16>, vector<8x8xf32> -> vector<8x8xf32>
    %45 = arith.addf %44, %17 : vector<8x8xf32>
    %cst_25 = arith.constant dense<0xFF800000> : vector<8xf32>
    %46 = vector.multi_reduction <maximumf>, %45, %cst_25 [1] : vector<8x8xf32> to vector<8xf32>
    %47 = vector.shape_cast %46 : vector<8xf32> to vector<8x1xf32>
    %48 = vector.broadcast %47 : vector<8x1xf32> to vector<8x8xf32>
    %49 = arith.subf %45, %48 : vector<8x8xf32>
    %50 = math.exp %49 : vector<8x8xf32>
    %cst_26 = arith.constant dense<0.000000e+00> : vector<8xf32>
    %51 = vector.multi_reduction <add>, %50, %cst_26 [1] : vector<8x8xf32> to vector<8xf32>
    %52 = vector.shape_cast %51 : vector<8xf32> to vector<8x1xf32>
    %53 = arith.truncf %50 : vector<8x8xf32> to vector<8x8xbf16>
    %cst_27 = arith.constant dense<0.000000e+00> : vector<8x8xf32>
    %54 = tpu.matmul %53, %43, %cst_27 {dimension_numbers = #tpu.dot_dimension_numbers<[1], [0], [0], [1], [0, 0, 1, 1], [], []>} : vector<8x8xbf16>, vector<8x8xbf16>, vector<8x8xf32> -> vector<8x8xf32>
    %55 = tpu.reciprocal %52 {approx = true} : vector<8x1xf32> -> vector<8x1xf32>
    %56 = vector.broadcast %55 : vector<8x1xf32> to vector<8x8xf32>
    %57 = arith.mulf %54, %56 : vector<8x8xf32>
    %c0_28 = arith.constant 0 : index
    %c8 = arith.constant 8 : index
    %58 = vector.load %arg18[%c0_28, %c8] : memref<8x32xf32, #tpu.memory_space<vmem>>, vector<8x8xf32>
    tpu.vector_store %arg18[%c0_28, %c8], %57 {strides = array<i32>} : memref<8x32xf32, #tpu.memory_space<vmem>>, vector<8x8xf32>,
    %59 = vector.broadcast %52 : vector<8x1xf32> to vector<8x8xf32>
    %60 = arith.divf %50, %59 : vector<8x8xf32>
    %c0_29 = arith.constant 0 : index
    %c1 = arith.constant 1 : index
    %c0_30 = arith.constant 0 : index
    %c0_31 = arith.constant 0 : index
    %61 = vector.load %arg15[%c0_29, %c1, %c0_30, %c0_31] : memref<1x4x8x8xf32, #tpu.memory_space<vmem>>, vector<1x1x8x8xf32>
    %62 = vector.shape_cast %61 : vector<1x1x8x8xf32> to vector<8x8xf32>
    %63 = vector.shape_cast %60 : vector<8x8xf32> to vector<1x1x8x8xf32>
    tpu.vector_store %arg15[%c0_29, %c1, %c0_30, %c0_31], %63 {strides = array<i32>} : memref<1x4x8x8xf32, #tpu.memory_space<vmem>>, vector<1x1x8x8xf32>,
    %64 = vector.extract_strided_slice %11 {offsets = [0, 16], sizes = [8, 8], strides = [1, 1]} : vector<8x32xbf16> to vector<8x8xbf16>
    %65 = vector.extract_strided_slice %12 {offsets = [0, 16], sizes = [8, 8], strides = [1, 1]} : vector<8x32xbf16> to vector<8x8xbf16>
    %66 = vector.extract_strided_slice %13 {offsets = [0, 16], sizes = [8, 8], strides = [1, 1]} : vector<8x32xbf16> to vector<8x8xbf16>
    %cst_32 = arith.constant dense<0.000000e+00> : vector<8x8xf32>
    %67 = tpu.matmul %64, %65, %cst_32 {dimension_numbers = #tpu.dot_dimension_numbers<[1], [1], [0], [0], [0, 0, 1, 0], [], []>} : vector<8x8xbf16>, vector<8x8xbf16>, vector<8x8xf32> -> vector<8x8xf32>
    %68 = arith.addf %67, %17 : vector<8x8xf32>
    %cst_33 = arith.constant dense<0xFF800000> : vector<8xf32>
    %69 = vector.multi_reduction <maximumf>, %68, %cst_33 [1] : vector<8x8xf32> to vector<8xf32>
    %70 = vector.shape_cast %69 : vector<8xf32> to vector<8x1xf32>
    %71 = vector.broadcast %70 : vector<8x1xf32> to vector<8x8xf32>
    %72 = arith.subf %68, %71 : vector<8x8xf32>
    %73 = math.exp %72 : vector<8x8xf32>
    %cst_34 = arith.constant dense<0.000000e+00> : vector<8xf32>
    %74 = vector.multi_reduction <add>, %73, %cst_34 [1] : vector<8x8xf32> to vector<8xf32>
    %75 = vector.shape_cast %74 : vector<8xf32> to vector<8x1xf32>
    %76 = arith.truncf %73 : vector<8x8xf32> to vector<8x8xbf16>
    %cst_35 = arith.constant dense<0.000000e+00> : vector<8x8xf32>
    %77 = tpu.matmul %76, %66, %cst_35 {dimension_numbers = #tpu.dot_dimension_numbers<[1], [0], [0], [1], [0, 0, 1, 1], [], []>} : vector<8x8xbf16>, vector<8x8xbf16>, vector<8x8xf32> -> vector<8x8xf32>
    %78 = tpu.reciprocal %75 {approx = true} : vector<8x1xf32> -> vector<8x1xf32>
    %79 = vector.broadcast %78 : vector<8x1xf32> to vector<8x8xf32>
    %80 = arith.mulf %77, %79 : vector<8x8xf32>
    %c0_36 = arith.constant 0 : index
    %c16 = arith.constant 16 : index
    %81 = vector.load %arg18[%c0_36, %c16] : memref<8x32xf32, #tpu.memory_space<vmem>>, vector<8x8xf32>
    tpu.vector_store %arg18[%c0_36, %c16], %80 {strides = array<i32>} : memref<8x32xf32, #tpu.memory_space<vmem>>, vector<8x8xf32>,
    %82 = vector.broadcast %75 : vector<8x1xf32> to vector<8x8xf32>
    %83 = arith.divf %73, %82 : vector<8x8xf32>
    %c0_37 = arith.constant 0 : index
    %c2 = arith.constant 2 : index
    %c0_38 = arith.constant 0 : index
    %c0_39 = arith.constant 0 : index
    %84 = vector.load %arg15[%c0_37, %c2, %c0_38, %c0_39] : memref<1x4x8x8xf32, #tpu.memory_space<vmem>>, vector<1x1x8x8xf32>
    %85 = vector.shape_cast %84 : vector<1x1x8x8xf32> to vector<8x8xf32>
    %86 = vector.shape_cast %83 : vector<8x8xf32> to vector<1x1x8x8xf32>
    tpu.vector_store %arg15[%c0_37, %c2, %c0_38, %c0_39], %86 {strides = array<i32>} : memref<1x4x8x8xf32, #tpu.memory_space<vmem>>, vector<1x1x8x8xf32>,
    %87 = vector.extract_strided_slice %11 {offsets = [0, 24], sizes = [8, 8], strides = [1, 1]} : vector<8x32xbf16> to vector<8x8xbf16>
    %88 = vector.extract_strided_slice %12 {offsets = [0, 24], sizes = [8, 8], strides = [1, 1]} : vector<8x32xbf16> to vector<8x8xbf16>
    %89 = vector.extract_strided_slice %13 {offsets = [0, 24], sizes = [8, 8], strides = [1, 1]} : vector<8x32xbf16> to vector<8x8xbf16>
    %cst_40 = arith.constant dense<0.000000e+00> : vector<8x8xf32>
    %90 = tpu.matmul %87, %88, %cst_40 {dimension_numbers = #tpu.dot_dimension_numbers<[1], [1], [0], [0], [0, 0, 1, 0], [], []>} : vector<8x8xbf16>, vector<8x8xbf16>, vector<8x8xf32> -> vector<8x8xf32>
    %91 = arith.addf %90, %17 : vector<8x8xf32>
    %cst_41 = arith.constant dense<0xFF800000> : vector<8xf32>
    %92 = vector.multi_reduction <maximumf>, %91, %cst_41 [1] : vector<8x8xf32> to vector<8xf32>
    %93 = vector.shape_cast %92 : vector<8xf32> to vector<8x1xf32>
    %94 = vector.broadcast %93 : vector<8x1xf32> to vector<8x8xf32>
    %95 = arith.subf %91, %94 : vector<8x8xf32>
    %96 = math.exp %95 : vector<8x8xf32>
    %cst_42 = arith.constant dense<0.000000e+00> : vector<8xf32>
    %97 = vector.multi_reduction <add>, %96, %cst_42 [1] : vector<8x8xf32> to vector<8xf32>
    %98 = vector.shape_cast %97 : vector<8xf32> to vector<8x1xf32>
    %99 = arith.truncf %96 : vector<8x8xf32> to vector<8x8xbf16>
    %cst_43 = arith.constant dense<0.000000e+00> : vector<8x8xf32>
    %100 = tpu.matmul %99, %89, %cst_43 {dimension_numbers = #tpu.dot_dimension_numbers<[1], [0], [0], [1], [0, 0, 1, 1], [], []>} : vector<8x8xbf16>, vector<8x8xbf16>, vector<8x8xf32> -> vector<8x8xf32>
    %101 = tpu.reciprocal %98 {approx = true} : vector<8x1xf32> -> vector<8x1xf32>
    %102 = vector.broadcast %101 : vector<8x1xf32> to vector<8x8xf32>
    %103 = arith.mulf %100, %102 : vector<8x8xf32>
    %c0_44 = arith.constant 0 : index
    %c24 = arith.constant 24 : index
    %104 = vector.load %arg18[%c0_44, %c24] : memref<8x32xf32, #tpu.memory_space<vmem>>, vector<8x8xf32>
    tpu.vector_store %arg18[%c0_44, %c24], %103 {strides = array<i32>} : memref<8x32xf32, #tpu.memory_space<vmem>>, vector<8x8xf32>,
    %105 = vector.broadcast %98 : vector<8x1xf32> to vector<8x8xf32>
    %106 = arith.divf %96, %105 : vector<8x8xf32>
    %c0_45 = arith.constant 0 : index
    %c3 = arith.constant 3 : index
    %c0_46 = arith.constant 0 : index
    %c0_47 = arith.constant 0 : index
    %107 = vector.load %arg15[%c0_45, %c3, %c0_46, %c0_47] : memref<1x4x8x8xf32, #tpu.memory_space<vmem>>, vector<1x1x8x8xf32>
    %108 = vector.shape_cast %107 : vector<1x1x8x8xf32> to vector<8x8xf32>
    %109 = vector.shape_cast %106 : vector<8x8xf32> to vector<1x1x8x8xf32>
    tpu.vector_store %arg15[%c0_45, %c3, %c0_46, %c0_47], %109 {strides = array<i32>} : memref<1x4x8x8xf32, #tpu.memory_space<vmem>>, vector<1x1x8x8xf32>,
    %c0_48 = arith.constant 0 : index
    %c0_49 = arith.constant 0 : index
    %110 = vector.load %arg18[%c0_48, %c0_49] : memref<8x32xf32, #tpu.memory_space<vmem>>, vector<8x32xf32>
    %111 = arith.truncf %110 : vector<8x32xf32> to vector<8x32xbf16>
    %c0_50 = arith.constant 0 : index
    %c0_51 = arith.constant 0 : index
    %112 = vector.load %arg12[%c0_50, %c0_51] : memref<32x32xbf16, #tpu.memory_space<vmem>>, vector<32x32xbf16>
    %cst_52 = arith.constant dense<0.000000e+00> : vector<8x32xf32>
    %113 = tpu.matmul %111, %112, %cst_52 {dimension_numbers = #tpu.dot_dimension_numbers<[1], [0], [0], [1], [0, 0, 1, 1], [], []>} : vector<8x32xbf16>, vector<32x32xbf16>, vector<8x32xf32> -> vector<8x32xf32>
    %c0_53 = arith.constant 0 : index
    %c0_54 = arith.constant 0 : index
    %114 = vector.load %arg13[%c0_53, %c0_54] : memref<1x32xf32, #tpu.memory_space<vmem>>, vector<1x32xf32>
    %115 = vector.broadcast %114 : vector<1x32xf32> to vector<8x32xf32>
    %116 = arith.addf %113, %115 : vector<8x32xf32>
    %117 = vector.shape_cast %116 : vector<8x32xf32> to vector<1x8x32xf32>
    %c0_55 = arith.constant 0 : index
    %c0_56 = arith.constant 0 : index
    %c0_57 = arith.constant 0 : index
    %118 = vector.load %arg14[%c0_55, %c0_56, %c0_57] : memref<1x8x32xf32, #tpu.memory_space<vmem>>, vector<1x8x32xf32>
    tpu.vector_store %arg14[%c0_55, %c0_56, %c0_57], %117 {strides = array<i32>} : memref<1x8x32xf32, #tpu.memory_space<vmem>>, vector<1x8x32xf32>,
    return
  }
  func.func @transform_0(%arg0: i32, %arg1: i32) -> (i32, i32, i32) {
    %c0_i32 = arith.constant 0 : i32
    %c0_i32_0 = arith.constant 0 : i32
    return %arg0, %arg1, %c0_i32 : i32, i32, i32
  }
  func.func @transform_1(%arg0: i32, %arg1: i32) -> (i32, i32, i32) {
    %c0_i32 = arith.constant 0 : i32
    %c0_i32_0 = arith.constant 0 : i32
    %c0_i32_1 = arith.constant 0 : i32
    return %arg0, %c0_i32, %c0_i32_0 : i32, i32, i32
  }
  func.func @transform_2(%arg0: i32, %arg1: i32) -> (i32, i32, i32) {
    %c0_i32 = arith.constant 0 : i32
    %c0_i32_0 = arith.constant 0 : i32
    %c0_i32_1 = arith.constant 0 : i32
    return %arg0, %c0_i32, %c0_i32_0 : i32, i32, i32
  }
  func.func @transform_3(%arg0: i32, %arg1: i32) -> (i32, i32, i32) {
    %c0_i32 = arith.constant 0 : i32
    %c0_i32_0 = arith.constant 0 : i32
    %c0_i32_1 = arith.constant 0 : i32
    return %arg0, %c0_i32, %c0_i32_0 : i32, i32, i32
  }
  func.func @transform_4(%arg0: i32, %arg1: i32) -> (i32, i32) {
    %c0_i32 = arith.constant 0 : i32
    %c0_i32_0 = arith.constant 0 : i32
    %c0_i32_1 = arith.constant 0 : i32
    return %c0_i32, %c0_i32_0 : i32, i32
  }
  func.func @transform_5(%arg0: i32, %arg1: i32) -> (i32, i32) {
    %c0_i32 = arith.constant 0 : i32
    %c0_i32_0 = arith.constant 0 : i32
    %c0_i32_1 = arith.constant 0 : i32
    return %c0_i32, %c0_i32_0 : i32, i32
  }
  func.func @transform_6(%arg0: i32, %arg1: i32) -> (i32, i32) {
    %c0_i32 = arith.constant 0 : i32
    %c0_i32_0 = arith.constant 0 : i32
    %c0_i32_1 = arith.constant 0 : i32
    return %c0_i32, %c0_i32_0 : i32, i32
  }
  func.func @transform_7(%arg0: i32, %arg1: i32) -> (i32, i32) {
    %c0_i32 = arith.constant 0 : i32
    %c0_i32_0 = arith.constant 0 : i32
    %c0_i32_1 = arith.constant 0 : i32
    return %c0_i32, %c0_i32_0 : i32, i32
  }
  func.func @transform_8(%arg0: i32, %arg1: i32) -> (i32, i32) {
    %c0_i32 = arith.constant 0 : i32
    %c0_i32_0 = arith.constant 0 : i32
    %c0_i32_1 = arith.constant 0 : i32
    return %c0_i32, %c0_i32_0 : i32, i32
  }
  func.func @transform_9(%arg0: i32, %arg1: i32) -> (i32, i32) {
    %c0_i32 = arith.constant 0 : i32
    %c0_i32_0 = arith.constant 0 : i32
    %c0_i32_1 = arith.constant 0 : i32
    return %c0_i32, %c0_i32_0 : i32, i32
  }
  func.func @transform_10(%arg0: i32, %arg1: i32) -> (i32, i32) {
    %c0_i32 = arith.constant 0 : i32
    %c0_i32_0 = arith.constant 0 : i32
    %c0_i32_1 = arith.constant 0 : i32
    return %c0_i32, %c0_i32_0 : i32, i32
  }
  func.func @transform_11(%arg0: i32, %arg1: i32) -> (i32, i32) {
    %c0_i32 = arith.constant 0 : i32
    %c0_i32_0 = arith.constant 0 : i32
    %c0_i32_1 = arith.constant 0 : i32
    return %c0_i32, %c0_i32_0 : i32, i32
  }
  func.func @transform_12(%arg0: i32, %arg1: i32) -> (i32, i32, i32) {
    %c0_i32 = arith.constant 0 : i32
    %c0_i32_0 = arith.constant 0 : i32
    return %arg0, %arg1, %c0_i32 : i32, i32, i32
  }
  func.func @transform_13(%arg0: i32, %arg1: i32) -> (i32, i32, i32, i32) {
    %c0_i32 = arith.constant 0 : i32
    %c0_i32_0 = arith.constant 0 : i32
    %c0_i32_1 = arith.constant 0 : i32
    return %arg0, %c0_i32, %arg1, %c0_i32_0 : i32, i32, i32, i32
  }
}

</mosaic_0001>

<llo_original>
// kernel: tpu_custom_call.1
$region0: #{tpu_custom_call.1}
  #allocation0 [shape = 'u32[]', space=smem, size = 0x4, offset = 0x4, fixed_abs, tag = 'smem constant byte address 0x4 - core index']
  #allocation1 [shape = 'u32[144,128]{1,0:T(1,128)}', space=vmem, size = 0x12000, scoped, tag = 'internal scratch']
  #allocation2 [shape = 'bf16[8,32]{1,0:T(8,128)(2,1)}', space=vmem, size = 0x800, scoped, tag = 'scratch operand']
  #allocation3 [shape = 'bf16[8,32]{1,0:T(8,128)(2,1)}', space=vmem, size = 0x800, scoped, tag = 'scratch operand']
  #allocation4 [shape = 'f32[8,32]{1,0:T(8,128)}', space=vmem, size = 0x1000, scoped, tag = 'scratch operand']
  %s0 = inlined_call_operand.hbm [shape: f32[2,8,32], index: 0, kind: input, shape index: {}]
  %s1 = inlined_call_operand.hbm [shape: f32[2,8,32], index: 1, kind: input, shape index: {}]
  %s2 = inlined_call_operand.hbm [shape: f32[2,8,32], index: 2, kind: input, shape index: {}]
  %s3 = inlined_call_operand.vmem [shape: f32[2,1,8], index: 3, kind: input, shape index: {}]
  %s4 = inlined_call_operand.hbm [shape: bf16[32,32], index: 4, kind: input, shape index: {}]
  %s5 = inlined_call_operand.hbm [shape: f32[1,32], index: 5, kind: input, shape index: {}]
  %s6 = inlined_call_operand.vmem [shape: bf16[32,32], index: 6, kind: input, shape index: {}]
  %s7 = inlined_call_operand.hbm [shape: f32[1,32], index: 7, kind: input, shape index: {}]
  %s8 = inlined_call_operand.hbm [shape: bf16[32,32], index: 8, kind: input, shape index: {}]
  %s9 = inlined_call_operand.hbm [shape: f32[1,32], index: 9, kind: input, shape index: {}]
  %s10 = inlined_call_operand.vmem [shape: bf16[32,32], index: 10, kind: input, shape index: {}]
  %s11 = inlined_call_operand.vmem [shape: f32[1,32], index: 11, kind: input, shape index: {}]
  %s12 = inlined_call_operand.hbm [shape: f32[2,8,32], index: 12, kind: output, shape index: {0}]
  %s13 = inlined_call_operand.hbm [shape: f32[2,4,8,8], index: 13, kind: output, shape index: {1}]
  %14 = xla_tuple %s12, %s13
  %s15 = sld [smem:[#allocation0]]
  $region125: #{tpu_custom_call.1} parent=0
    _
  %s17 = ssub.s32 1, %s15
  %s18 = scalar_select 0, %s17, %s15
  $region1: #{tpu_custom_call.1} parent=0
    #allocation5 [shape = 'u8[8192]{0}', space=vmem, size = 0x2000, scoped, tag = 'input window, operand 0']
    #allocation6 [shape = 's32[2]{0}', space=sflag, size = 0x8, scoped, tag = 'scoped memory for tpu_custom_call.1']
    #allocation7 [shape = 's32[2]{0}', space=sflag, size = 0x8, scoped, tag = 'scoped memory for tpu_custom_call.1']
    #allocation8 [shape = 'u8[8192]{0}', space=vmem, size = 0x2000, scoped, tag = 'input window, operand 1']
    #allocation9 [shape = 's32[2]{0}', space=sflag, size = 0x8, scoped, tag = 'scoped memory for tpu_custom_call.1']
    #allocation10 [shape = 'u8[8192]{0}', space=vmem, size = 0x2000, scoped, tag = 'input window, operand 2']
    #allocation11 [shape = 'u8[8192]{0}', space=vmem, size = 0x2000, scoped, tag = 'input window, operand 4, single buffered']
    #allocation12 [shape = 's32[1]{0}', space=sflag, size = 0x4, scoped, tag = 'scoped memory for tpu_custom_call.1']
    #allocation13 [shape = 'u8[512]{0}', space=vmem, size = 0x400, scoped, tag = 'input window, operand 5, single buffered']
    #allocation14 [shape = 'u8[512]{0}', space=vmem, size = 0x400, scoped, tag = 'input window, operand 7, single buffered']
    #allocation15 [shape = 's32[1]{0}', space=sflag, size = 0x4, scoped, tag = 'scoped memory for tpu_custom_call.1']
    #allocation16 [shape = 'u8[8192]{0}', space=vmem, size = 0x2000, scoped, tag = 'input window, operand 8, single buffered']
    #allocation17 [shape = 'u8[512]{0}', space=vmem, size = 0x400, scoped, tag = 'input window, operand 9, single buffered']
    #allocation18 [shape = 's32[1]{0}', space=sflag, size = 0x4, scoped, tag = 'scoped memory for tpu_custom_call.1']
    #allocation19 [shape = 'u8[8192]{0}', space=vmem, size = 0x2000, scoped, tag = 'output window, operand 0']
    #allocation20 [shape = 'u8[32768]{0}', space=vmem, size = 0x8000, scoped, tag = 'output window, operand 1']
    #allocation21 [shape = 's32[2]{0}', space=sflag, size = 0x8, scoped, tag = 'scoped memory for tpu_custom_call.1']
    %19 = vsyncpa [#allocation6], 0
    %s20 = scalar_lea.sflag [#allocation6], 1
    %21 = vsyncpa %s20, 0
    %22 = vsyncpa [#allocation9], 0
    %s23 = scalar_lea.sflag [#allocation9], 1
    %24 = vsyncpa %s23, 0
    %25 = vsyncpa [#allocation12], 0
    %26 = vsyncpa [#allocation15], 0
    %27 = vsyncpa [#allocation18], 0
    %28 = vsyncpa [#allocation7], 0
    %s29 = scalar_lea.sflag [#allocation7], 1
    %30 = vsyncpa %s29, 0
    %31 = vsyncpa [#allocation21], 0
    %s32 = scalar_lea.sflag [#allocation21], 1
    %33 = vsyncpa %s32, 0
    loop: start=0, step=1, limit=4
    $region2: #{tpu_custom_call.1} parent=1 // loop_pre_header
      _
    $region3: #{tpu_custom_call.1} parent=1 // loop_header
      %s35 = sphi 0, %s39
      %p36 = scmp.ge.s32.totalorder %s35, 4
      %s42 = sphi 0, %s54
      %s43 = sphi 0, %s50
      %s44 = sphi 0, %s42
      %s45 = sphi 0, %s43
      %s46 = sphi 0, %s44
      %s47 = sphi 0, %s45
      %s59 = sphi 0, %s61
      %s62 = sphi 0, %s59
      %s63 = sphi 0, %s62
      %s79 = sphi 0, %s63
      %s85 = sphi 0, %s87
      %s88 = sphi 0, %s85
      %s89 = sphi 0, %s88
      %s105 = sphi 0, %s89
      %s111 = sphi 0, %s113
      %s114 = sphi 0, %s111
      %s115 = sphi 0, %s114
      %s131 = sphi 0, %s115
      %s137 = sphi 0, %s139
      %s140 = sphi 0, %s137
      %s141 = sphi 0, %s140
      %s157 = sphi 0, %s141
      %s161 = sphi 0, %s161
      %s163 = sphi 0, %s161
      %s164 = sphi 0, %s163
      %s178 = sphi 0, %s164
      %s182 = sphi 0, %s182
      %s184 = sphi 0, %s182
      %s185 = sphi 0, %s184
      %s199 = sphi 0, %s185
      %s203 = sphi 0, %s203
      %s205 = sphi 0, %s203
      %s206 = sphi 0, %s205
      %s220 = sphi 0, %s206
      %s224 = sphi 0, %s224
      %s226 = sphi 0, %s224
      %s227 = sphi 0, %s226
      %s241 = sphi 0, %s227
      %s245 = sphi 0, %s245
      %s247 = sphi 0, %s245
      %s248 = sphi 0, %s247
      %s262 = sphi 0, %s248
      %s266 = sphi 0, %s266
      %s268 = sphi 0, %s266
      %s269 = sphi 0, %s268
      %s283 = sphi 0, %s269
      %s287 = sphi 0, %s287
      %s289 = sphi 0, %s287
      %s290 = sphi 0, %s289
      %s304 = sphi 0, %s290
      %s308 = sphi 0, %s308
      %s310 = sphi 0, %s308
      %s311 = sphi 0, %s310
      %s325 = sphi 0, %s311
      %s333 = sphi 0, %s335
      %s336 = sphi 0, %s333
      %s337 = sphi 0, %s336
      %s353 = sphi 0, %s337
      %s361 = sphi 0, %s363
      %s364 = sphi 0, %s361
      %s365 = sphi 0, %s364
      %s381 = sphi 0, %s365
    $region4: #{tpu_custom_call.1} parent=1 // loop_header_branch
      %38 = sbr.rel (%p36) target = $region8
    $region5: #{tpu_custom_call.1} parent=1 // loop_body
      %s40 = ssub.s32 %s35, 1
      %s41 = ssub.s32 %s35, 2
      %s48 = sadd.s32 1, %s43
      %p49 = scmp.ge.s32.totalorder %s48, 1
      %s50 = scalar_select %p49, 0, %s48
      %s51 = sadd.s32 1, %s42
      %s52 = scalar_select %p49, %s51, %s42
      %p53 = scmp.ge.s32.totalorder %s52, 2
      %s54 = scalar_select %p53, 0, %s52
      %s55 = ssub.s32 %s42, %s54
      %s56 = ssub.s32 %s43, %s50
      %s57 = sor.u32 %s55, %s56
      %p58 = scmp.eq.s32.totalorder %s57, 0
      %s60 = sadd.s32 %s59, 1
      %s61 = scalar_select %p58, %s59, %s60
      %p64 = pneg %p58
      %p65 = scmp.eq.s32.totalorder %s35, 1
      %p66 = por %p64, %p65
      %p67 = scmp.ne.s32.totalorder %s59, %s62
      %p68 = scmp.eq.s32.totalorder %s35, 0
      %p69 = por %p67, %p68
      %p70 = scmp.ne.s32.totalorder %s59, %s62
      %p71 = scmp.eq.s32.totalorder %s40, 1
      %p72 = por %p70, %p71
      %p73 = scmp.ne.s32.totalorder %s62, %s63
      %p74 = scmp.eq.s32.totalorder %s40, 0
      %p75 = por %p73, %p74
      %p76 = scmp.ne.s32.totalorder %s62, %s63
      %p77 = scmp.eq.s32.totalorder %s41, 1
      %p78 = por %p76, %p77
      %p80 = scmp.ne.s32.totalorder %s63, %s79
      %p81 = scmp.eq.s32.totalorder %s41, 0
      %p82 = por %p80, %p81
      %s83 = ssub.s32 %s42, %s54
      %p84 = scmp.eq.s32.totalorder %s83, 0
      %s86 = sadd.s32 %s85, 1
      %s87 = scalar_select %p84, %s85, %s86
      %p90 = pneg %p84
      %p91 = scmp.eq.s32.totalorder %s35, 1
      %p92 = por %p90, %p91
      %p93 = scmp.ne.s32.totalorder %s85, %s88
      %p94 = scmp.eq.s32.totalorder %s35, 0
      %p95 = por %p93, %p94
      %p96 = scmp.ne.s32.totalorder %s85, %s88
      %p97 = scmp.eq.s32.totalorder %s40, 1
      %p98 = por %p96, %p97
      %p99 = scmp.ne.s32.totalorder %s88, %s89
      %p100 = scmp.eq.s32.totalorder %s40, 0
      %p101 = por %p99, %p100
      %p102 = scmp.ne.s32.totalorder %s88, %s89
      %p103 = scmp.eq.s32.totalorder %s41, 1
      %p104 = por %p102, %p103
      %p106 = scmp.ne.s32.totalorder %s89, %s105
      %p107 = scmp.eq.s32.totalorder %s41, 0
      %p108 = por %p106, %p107
      %s109 = ssub.s32 %s42, %s54
      %p110 = scmp.eq.s32.totalorder %s109, 0
      %s112 = sadd.s32 %s111, 1
      %s113 = scalar_select %p110, %s111, %s112
      %p116 = pneg %p110
      %p117 = scmp.eq.s32.totalorder %s35, 1
      %p118 = por %p116, %p117
      %p119 = scmp.ne.s32.totalorder %s111, %s114
      %p120 = scmp.eq.s32.totalorder %s35, 0
      %p121 = por %p119, %p120
      %p122 = scmp.ne.s32.totalorder %s111, %s114
      %p123 = scmp.eq.s32.totalorder %s40, 1
      %p124 = por %p122, %p123
      %p125 = scmp.ne.s32.totalorder %s114, %s115
      %p126 = scmp.eq.s32.totalorder %s40, 0
      %p127 = por %p125, %p126
      %p128 = scmp.ne.s32.totalorder %s114, %s115
      %p129 = scmp.eq.s32.totalorder %s41, 1
      %p130 = por %p128, %p129
      %p132 = scmp.ne.s32.totalorder %s115, %s131
      %p133 = scmp.eq.s32.totalorder %s41, 0
      %p134 = por %p132, %p133
      %s135 = ssub.s32 %s42, %s54
      %p136 = scmp.eq.s32.totalorder %s135, 0
      %s138 = sadd.s32 %s137, 1
      %s139 = scalar_select %p136, %s137, %s138
      %p142 = pneg %p136
      %p143 = scmp.eq.s32.totalorder %s35, 1
      %p144 = por %p142, %p143
      %p145 = scmp.ne.s32.totalorder %s137, %s140
      %p146 = scmp.eq.s32.totalorder %s35, 0
      %p147 = por %p145, %p146
      %p148 = scmp.ne.s32.totalorder %s137, %s140
      %p149 = scmp.eq.s32.totalorder %s40, 1
      %p150 = por %p148, %p149
      %p151 = scmp.ne.s32.totalorder %s140, %s141
      %p152 = scmp.eq.s32.totalorder %s40, 0
      %p153 = por %p151, %p152
      %p154 = scmp.ne.s32.totalorder %s140, %s141
      %p155 = scmp.eq.s32.totalorder %s41, 1
      %p156 = por %p154, %p155
      %p158 = scmp.ne.s32.totalorder %s141, %s157
      %p159 = scmp.eq.s32.totalorder %s41, 0
      %p160 = por %p158, %p159
      %s162 = sadd.s32 %s161, 1
      %p165 = scmp.eq.s32.totalorder %s35, 1
      %p166 = scmp.ne.s32.totalorder %s161, %s163
      %p167 = scmp.eq.s32.totalorder %s35, 0
      %p168 = por %p166, %p167
      %p169 = scmp.ne.s32.totalorder %s161, %s163
      %p170 = scmp.eq.s32.totalorder %s40, 1
      %p171 = por %p169, %p170
      %p172 = scmp.ne.s32.totalorder %s163, %s164
      %p173 = scmp.eq.s32.totalorder %s40, 0
      %p174 = por %p172, %p173
      %p175 = scmp.ne.s32.totalorder %s163, %s164
      %p176 = scmp.eq.s32.totalorder %s41, 1
      %p177 = por %p175, %p176
      %p179 = scmp.ne.s32.totalorder %s164, %s178
      %p180 = scmp.eq.s32.totalorder %s41, 0
      %p181 = por %p179, %p180
      %s183 = sadd.s32 %s182, 1
      %p186 = scmp.eq.s32.totalorder %s35, 1
      %p187 = scmp.ne.s32.totalorder %s182, %s184
      %p188 = scmp.eq.s32.totalorder %s35, 0
      %p189 = por %p187, %p188
      %p190 = scmp.ne.s32.totalorder %s182, %s184
      %p191 = scmp.eq.s32.totalorder %s40, 1
      %p192 = por %p190, %p191
      %p193 = scmp.ne.s32.totalorder %s184, %s185
      %p194 = scmp.eq.s32.totalorder %s40, 0
      %p195 = por %p193, %p194
      %p196 = scmp.ne.s32.totalorder %s184, %s185
      %p197 = scmp.eq.s32.totalorder %s41, 1
      %p198 = por %p196, %p197
      %p200 = scmp.ne.s32.totalorder %s185, %s199
      %p201 = scmp.eq.s32.totalorder %s41, 0
      %p202 = por %p200, %p201
      %s204 = sadd.s32 %s203, 1
      %p207 = scmp.eq.s32.totalorder %s35, 1
      %p208 = scmp.ne.s32.totalorder %s203, %s205
      %p209 = scmp.eq.s32.totalorder %s35, 0
      %p210 = por %p208, %p209
      %p211 = scmp.ne.s32.totalorder %s203, %s205
      %p212 = scmp.eq.s32.totalorder %s40, 1
      %p213 = por %p211, %p212
      %p214 = scmp.ne.s32.totalorder %s205, %s206
      %p215 = scmp.eq.s32.totalorder %s40, 0
      %p216 = por %p214, %p215
      %p217 = scmp.ne.s32.totalorder %s205, %s206
      %p218 = scmp.eq.s32.totalorder %s41, 1
      %p219 = por %p217, %p218
      %p221 = scmp.ne.s32.totalorder %s206, %s220
      %p222 = scmp.eq.s32.totalorder %s41, 0
      %p223 = por %p221, %p222
      %s225 = sadd.s32 %s224, 1
      %p228 = scmp.eq.s32.totalorder %s35, 1
      %p229 = scmp.ne.s32.totalorder %s224, %s226
      %p230 = scmp.eq.s32.totalorder %s35, 0
      %p231 = por %p229, %p230
      %p232 = scmp.ne.s32.totalorder %s224, %s226
      %p233 = scmp.eq.s32.totalorder %s40, 1
      %p234 = por %p232, %p233
      %p235 = scmp.ne.s32.totalorder %s226, %s227
      %p236 = scmp.eq.s32.totalorder %s40, 0
      %p237 = por %p235, %p236
      %p238 = scmp.ne.s32.totalorder %s226, %s227
      %p239 = scmp.eq.s32.totalorder %s41, 1
      %p240 = por %p238, %p239
      %p242 = scmp.ne.s32.totalorder %s227, %s241
      %p243 = scmp.eq.s32.totalorder %s41, 0
      %p244 = por %p242, %p243
      %s246 = sadd.s32 %s245, 1
      %p249 = scmp.eq.s32.totalorder %s35, 1
      %p250 = scmp.ne.s32.totalorder %s245, %s247
      %p251 = scmp.eq.s32.totalorder %s35, 0
      %p252 = por %p250, %p251
      %p253 = scmp.ne.s32.totalorder %s245, %s247
      %p254 = scmp.eq.s32.totalorder %s40, 1
      %p255 = por %p253, %p254
      %p256 = scmp.ne.s32.totalorder %s247, %s248
      %p257 = scmp.eq.s32.totalorder %s40, 0
      %p258 = por %p256, %p257
      %p259 = scmp.ne.s32.totalorder %s247, %s248
      %p260 = scmp.eq.s32.totalorder %s41, 1
      %p261 = por %p259, %p260
      %p263 = scmp.ne.s32.totalorder %s248, %s262
      %p264 = scmp.eq.s32.totalorder %s41, 0
      %p265 = por %p263, %p264
      %s267 = sadd.s32 %s266, 1
      %p270 = scmp.eq.s32.totalorder %s35, 1
      %p271 = scmp.ne.s32.totalorder %s266, %s268
      %p272 = scmp.eq.s32.totalorder %s35, 0
      %p273 = por %p271, %p272
      %p274 = scmp.ne.s32.totalorder %s266, %s268
      %p275 = scmp.eq.s32.totalorder %s40, 1
      %p276 = por %p274, %p275
      %p277 = scmp.ne.s32.totalorder %s268, %s269
      %p278 = scmp.eq.s32.totalorder %s40, 0
      %p279 = por %p277, %p278
      %p280 = scmp.ne.s32.totalorder %s268, %s269
      %p281 = scmp.eq.s32.totalorder %s41, 1
      %p282 = por %p280, %p281
      %p284 = scmp.ne.s32.totalorder %s269, %s283
      %p285 = scmp.eq.s32.totalorder %s41, 0
      %p286 = por %p284, %p285
      %s288 = sadd.s32 %s287, 1
      %p291 = scmp.eq.s32.totalorder %s35, 1
      %p292 = scmp.ne.s32.totalorder %s287, %s289
      %p293 = scmp.eq.s32.totalorder %s35, 0
      %p294 = por %p292, %p293
      %p295 = scmp.ne.s32.totalorder %s287, %s289
      %p296 = scmp.eq.s32.totalorder %s40, 1
      %p297 = por %p295, %p296
      %p298 = scmp.ne.s32.totalorder %s289, %s290
      %p299 = scmp.eq.s32.totalorder %s40, 0
      %p300 = por %p298, %p299
      %p301 = scmp.ne.s32.totalorder %s289, %s290
      %p302 = scmp.eq.s32.totalorder %s41, 1
      %p303 = por %p301, %p302
      %p305 = scmp.ne.s32.totalorder %s290, %s304
      %p306 = scmp.eq.s32.totalorder %s41, 0
      %p307 = por %p305, %p306
      %s309 = sadd.s32 %s308, 1
      %p312 = scmp.eq.s32.totalorder %s35, 1
      %p313 = scmp.ne.s32.totalorder %s308, %s310
      %p314 = scmp.eq.s32.totalorder %s35, 0
      %p315 = por %p313, %p314
      %p316 = scmp.ne.s32.totalorder %s308, %s310
      %p317 = scmp.eq.s32.totalorder %s40, 1
      %p318 = por %p316, %p317
      %p319 = scmp.ne.s32.totalorder %s310, %s311
      %p320 = scmp.eq.s32.totalorder %s40, 0
      %p321 = por %p319, %p320
      %p322 = scmp.ne.s32.totalorder %s310, %s311
      %p323 = scmp.eq.s32.totalorder %s41, 1
      %p324 = por %p322, %p323
      %p326 = scmp.ne.s32.totalorder %s311, %s325
      %p327 = scmp.eq.s32.totalorder %s41, 0
      %p328 = por %p326, %p327
      %s329 = ssub.s32 %s42, %s54
      %s330 = ssub.s32 %s43, %s50
      %s331 = sor.u32 %s329, %s330
      %p332 = scmp.eq.s32.totalorder %s331, 0
      %s334 = sadd.s32 %s333, 1
      %s335 = scalar_select %p332, %s333, %s334
      %p338 = pneg %p332
      %p339 = scmp.eq.s32.totalorder %s35, 1
      %p340 = por %p338, %p339
      %p341 = scmp.ne.s32.totalorder %s333, %s336
      %p342 = scmp.eq.s32.totalorder %s35, 0
      %p343 = por %p341, %p342
      %p344 = scmp.ne.s32.totalorder %s333, %s336
      %p345 = scmp.eq.s32.totalorder %s40, 1
      %p346 = por %p344, %p345
      %p347 = scmp.ne.s32.totalorder %s336, %s337
      %p348 = scmp.eq.s32.totalorder %s40, 0
      %p349 = por %p347, %p348
      %p350 = scmp.ne.s32.totalorder %s336, %s337
      %p351 = scmp.eq.s32.totalorder %s41, 1
      %p352 = por %p350, %p351
      %p354 = scmp.ne.s32.totalorder %s337, %s353
      %p355 = scmp.eq.s32.totalorder %s41, 0
      %p356 = por %p354, %p355
      %s357 = ssub.s32 %s42, %s54
      %s358 = ssub.s32 %s43, %s50
      %s359 = sor.u32 %s357, %s358
      %p360 = scmp.eq.s32.totalorder %s359, 0
      %s362 = sadd.s32 %s361, 1
      %s363 = scalar_select %p360, %s361, %s362
      %p366 = pneg %p360
      %p367 = scmp.eq.s32.totalorder %s35, 1
      %p368 = por %p366, %p367
      %p369 = scmp.ne.s32.totalorder %s361, %s364
      %p370 = scmp.eq.s32.totalorder %s35, 0
      %p371 = por %p369, %p370
      %p372 = scmp.ne.s32.totalorder %s361, %s364
      %p373 = scmp.eq.s32.totalorder %s40, 1
      %p374 = por %p372, %p373
      %p375 = scmp.ne.s32.totalorder %s364, %s365
      %p376 = scmp.eq.s32.totalorder %s40, 0
      %p377 = por %p375, %p376
      %p378 = scmp.ne.s32.totalorder %s364, %s365
      %p379 = scmp.eq.s32.totalorder %s41, 1
      %p380 = por %p378, %p379
      %p382 = scmp.ne.s32.totalorder %s365, %s381
      %p383 = scmp.eq.s32.totalorder %s41, 0
      %p384 = por %p382, %p383
      %p385 = scmp.le.s32.totalorder 1, %s35
      %p386 = scmp.lt.s32.totalorder %s35, 3
      %p387 = pnand %p385, %p386
      %p388 = pneg %p387
      // Predicated region
      $region9: #{tpu_custom_call.1} parent=5 // pred_check
        _
      $region10: #{tpu_custom_call.1} parent=5 // pred_check_branch
        %390 = sbr.rel (%p387) target = $region12
      $region11: #{tpu_custom_call.1} parent=5 // pred_region
        %s391 = ssub.s32 %s35, 1
        // Predicated region
        $region13: #{tpu_custom_call.1} parent=11 // pred_check
          %p392 = pneg %p174
        $region14: #{tpu_custom_call.1} parent=11 // pred_check_branch
          %394 = sbr.rel (%p392) target = $region16
        $region15: #{tpu_custom_call.1} parent=11 // pred_region
          %s396 = ssub.s32 256, 256
          %397 = vsyncadd [#allocation12], %s396
          %s398 = sshll.u32 [#allocation11], 4
          %s399 = int_to_ptr.vmem [resolvable:$true] %s398
          %404 = dma.hbm_to_vmem [thread:$0]  %s4, 256, %s399, [#allocation12], 64, 64, 4
        $region16: #{tpu_custom_call.1} parent=11 // pred_fallthru
          _
        // Predicated region
        $region17: #{tpu_custom_call.1} parent=11 // pred_check
          %p405 = pneg %p195
        $region18: #{tpu_custom_call.1} parent=11 // pred_check_branch
          %407 = sbr.rel (%p405) target = $region20
        $region19: #{tpu_custom_call.1} parent=11 // pred_region
          %s409 = ssub.s32 16, 16
          %410 = vsyncadd [#allocation12], %s409
          %s412 = sshll.u32 [#allocation13], 4
          %s413 = int_to_ptr.vmem [resolvable:$true] %s412
          %415 = dma.hbm_to_vmem [thread:$0]  %s5, 16, %s413, [#allocation12]
        $region20: #{tpu_custom_call.1} parent=11 // pred_fallthru
          _
        // Predicated region
        $region21: #{tpu_custom_call.1} parent=11 // pred_check
          %p416 = pneg %p216
        $region22: #{tpu_custom_call.1} parent=11 // pred_check_branch
          %418 = sbr.rel (%p416) target = $region24
        $region23: #{tpu_custom_call.1} parent=11 // pred_region
          _
        $region24: #{tpu_custom_call.1} parent=11 // pred_fallthru
          _
        // Predicated region
        $region25: #{tpu_custom_call.1} parent=11 // pred_check
          %p419 = pneg %p237
        $region26: #{tpu_custom_call.1} parent=11 // pred_check_branch
          %421 = sbr.rel (%p419) target = $region28
        $region27: #{tpu_custom_call.1} parent=11 // pred_region
          %s423 = ssub.s32 16, 16
          %424 = vsyncadd [#allocation15], %s423
          %s426 = sshll.u32 [#allocation14], 4
          %s427 = int_to_ptr.vmem [resolvable:$true] %s426
          %429 = dma.hbm_to_vmem [thread:$0]  %s7, 16, %s427, [#allocation15]
        $region28: #{tpu_custom_call.1} parent=11 // pred_fallthru
          _
        // Predicated region
        $region29: #{tpu_custom_call.1} parent=11 // pred_check
          %p430 = pneg %p258
        $region30: #{tpu_custom_call.1} parent=11 // pred_check_branch
          %432 = sbr.rel (%p430) target = $region32
        $region31: #{tpu_custom_call.1} parent=11 // pred_region
          %s434 = ssub.s32 256, 256
          %435 = vsyncadd [#allocation15], %s434
          %s436 = sshll.u32 [#allocation16], 4
          %s437 = int_to_ptr.vmem [resolvable:$true] %s436
          %442 = dma.hbm_to_vmem [thread:$0]  %s8, 256, %s437, [#allocation15], 64, 64, 4
        $region32: #{tpu_custom_call.1} parent=11 // pred_fallthru
          _
        // Predicated region
        $region33: #{tpu_custom_call.1} parent=11 // pred_check
          %p443 = pneg %p279
        $region34: #{tpu_custom_call.1} parent=11 // pred_check_branch
          %445 = sbr.rel (%p443) target = $region36
        $region35: #{tpu_custom_call.1} parent=11 // pred_region
          %s447 = ssub.s32 16, 16
          %448 = vsyncadd [#allocation18], %s447
          %s450 = sshll.u32 [#allocation17], 4
          %s451 = int_to_ptr.vmem [resolvable:$true] %s450
          %453 = dma.hbm_to_vmem [thread:$0]  %s9, 16, %s451, [#allocation18]
        $region36: #{tpu_custom_call.1} parent=11 // pred_fallthru
          _
        // Predicated region
        $region37: #{tpu_custom_call.1} parent=11 // pred_check
          %p454 = pneg %p300
        $region38: #{tpu_custom_call.1} parent=11 // pred_check_branch
          %456 = sbr.rel (%p454) target = $region40
        $region39: #{tpu_custom_call.1} parent=11 // pred_region
          _
        $region40: #{tpu_custom_call.1} parent=11 // pred_fallthru
          _
        // Predicated region
        $region41: #{tpu_custom_call.1} parent=11 // pred_check
          %p457 = pneg %p321
        $region42: #{tpu_custom_call.1} parent=11 // pred_check_branch
          %459 = sbr.rel (%p457) target = $region44
        $region43: #{tpu_custom_call.1} parent=11 // pred_region
          _
        $region44: #{tpu_custom_call.1} parent=11 // pred_fallthru
          _
      $region12: #{tpu_custom_call.1} parent=5 // pred_fallthru
        _
      %p460 = scmp.lt.s32.totalorder %s35, 2
      // Predicated region
      $region45: #{tpu_custom_call.1} parent=5 // pred_check
        %p461 = pneg %p460
      $region46: #{tpu_custom_call.1} parent=5 // pred_check_branch
        %463 = sbr.rel (%p461) target = $region48
      $region47: #{tpu_custom_call.1} parent=5 // pred_region
        // Predicated region
        $region49: #{tpu_custom_call.1} parent=47 // pred_check
          %p464 = pneg %p69
        $region50: #{tpu_custom_call.1} parent=47 // pred_check_branch
          %466 = sbr.rel (%p464) target = $region52
        $region51: #{tpu_custom_call.1} parent=47 // pred_region
          %s467 = sand.u32 %s59, 1
          %s468 = scalar_lea.sflag [#allocation6], %s467
          %s469 = sand.u32 %s59, 1
          %s470 = smul.addr %s469, 8
          %s471 = scalar_lea.vmem [#allocation5], %s470
          %s473 = ssub.s32 128, 128
          %474 = vsyncadd %s468, %s473
          %s475 = sadd.s32 %s43, %s42
          %s476 = smul.addr %s475, 128
          %s477 = scalar_lea.hbm %s0, %s476
          %s479 = sshll.u32 %s471, 4
          %s480 = int_to_ptr.vmem [resolvable:$true] %s479
          %482 = dma.hbm_to_vmem [thread:$0]  %s477, 128, %s480, %s468
        $region52: #{tpu_custom_call.1} parent=47 // pred_fallthru
          _
        // Predicated region
        $region53: #{tpu_custom_call.1} parent=47 // pred_check
          %p483 = pneg %p95
        $region54: #{tpu_custom_call.1} parent=47 // pred_check_branch
          %485 = sbr.rel (%p483) target = $region56
        $region55: #{tpu_custom_call.1} parent=47 // pred_region
          %s486 = sand.u32 %s35, 1
          %s487 = scalar_lea.sflag [#allocation9], %s486
          %s488 = sand.u32 %s85, 1
          %s489 = smul.addr %s488, 8
          %s490 = scalar_lea.vmem [#allocation8], %s489
          %s492 = ssub.s32 128, 128
          %493 = vsyncadd %s487, %s492
          %s494 = smul.addr %s42, 128
          %s495 = scalar_lea.hbm %s1, %s494
          %s497 = sshll.u32 %s490, 4
          %s498 = int_to_ptr.vmem [resolvable:$true] %s497
          %500 = dma.hbm_to_vmem [thread:$0]  %s495, 128, %s498, %s487
        $region56: #{tpu_custom_call.1} parent=47 // pred_fallthru
          _
        // Predicated region
        $region57: #{tpu_custom_call.1} parent=47 // pred_check
          %p501 = pneg %p121
        $region58: #{tpu_custom_call.1} parent=47 // pred_check_branch
          %503 = sbr.rel (%p501) target = $region60
        $region59: #{tpu_custom_call.1} parent=47 // pred_region
          %s504 = sand.u32 %s35, 1
          %s505 = scalar_lea.sflag [#allocation9], %s504
          %s506 = sand.u32 %s111, 1
          %s507 = smul.addr %s506, 8
          %s508 = scalar_lea.vmem [#allocation10], %s507
          %s510 = ssub.s32 128, 128
          %511 = vsyncadd %s505, %s510
          %s512 = smul.addr %s42, 128
          %s513 = scalar_lea.hbm %s2, %s512
          %s515 = sshll.u32 %s508, 4
          %s516 = int_to_ptr.vmem [resolvable:$true] %s515
          %518 = dma.hbm_to_vmem [thread:$0]  %s513, 128, %s516, %s505
        $region60: #{tpu_custom_call.1} parent=47 // pred_fallthru
          _
        // Predicated region
        $region61: #{tpu_custom_call.1} parent=47 // pred_check
          %p519 = pneg %p147
        $region62: #{tpu_custom_call.1} parent=47 // pred_check_branch
          %521 = sbr.rel (%p519) target = $region64
        $region63: #{tpu_custom_call.1} parent=47 // pred_region
          %p522 = scmp.lt.s32.totalorder %s42, 1
          %s523 = scalar_select %p522, %s42, 1
          %s524 = scalar_lea.vmem %s3, %s523
        $region64: #{tpu_custom_call.1} parent=47 // pred_fallthru
          _
      $region48: #{tpu_custom_call.1} parent=5 // pred_fallthru
        _
      %p525 = scmp.le.s32.totalorder 1, %s35
      %p526 = scmp.lt.s32.totalorder %s35, 3
      %p527 = pnand %p525, %p526
      %p528 = pneg %p527
      // Predicated region
      $region65: #{tpu_custom_call.1} parent=5 // pred_check
        _
      $region66: #{tpu_custom_call.1} parent=5 // pred_check_branch
        %530 = sbr.rel (%p527) target = $region68
      $region67: #{tpu_custom_call.1} parent=5 // pred_region
        %s531 = ssub.s32 %s35, 1
        %s532 = sand.u32 %s62, 1
        %s533 = scalar_lea.sflag [#allocation6], %s532
        %s534 = sand.u32 %s62, 1
        %s535 = smul.addr %s534, 8
        %s536 = scalar_lea.vmem [#allocation5], %s535
        // Predicated region
        $region69: #{tpu_custom_call.1} parent=67 // pred_check
          %p537 = pneg %p75
        $region70: #{tpu_custom_call.1} parent=67 // pred_check_branch
          %539 = sbr.rel (%p537) target = $region72
        $region71: #{tpu_custom_call.1} parent=67 // pred_region
          %540 = dma.done %s533, 128
        $region72: #{tpu_custom_call.1} parent=67 // pred_fallthru
          _
        %s541 = sand.u32 %s40, 1
        %s542 = scalar_lea.sflag [#allocation9], %s541
        %s543 = sand.u32 %s88, 1
        %s544 = smul.addr %s543, 8
        %s545 = scalar_lea.vmem [#allocation8], %s544
        // Predicated region
        $region73: #{tpu_custom_call.1} parent=67 // pred_check
          %p546 = pneg %p101
        $region74: #{tpu_custom_call.1} parent=67 // pred_check_branch
          %548 = sbr.rel (%p546) target = $region76
        $region75: #{tpu_custom_call.1} parent=67 // pred_region
          %549 = dma.done %s542, 128
        $region76: #{tpu_custom_call.1} parent=67 // pred_fallthru
          _
        %s550 = sand.u32 %s40, 1
        %s551 = scalar_lea.sflag [#allocation9], %s550
        %s552 = sand.u32 %s114, 1
        %s553 = smul.addr %s552, 8
        %s554 = scalar_lea.vmem [#allocation10], %s553
        // Predicated region
        $region77: #{tpu_custom_call.1} parent=67 // pred_check
          %p555 = pneg %p127
        $region78: #{tpu_custom_call.1} parent=67 // pred_check_branch
          %557 = sbr.rel (%p555) target = $region80
        $region79: #{tpu_custom_call.1} parent=67 // pred_region
          %558 = dma.done %s551, 128
        $region80: #{tpu_custom_call.1} parent=67 // pred_fallthru
          _
        // Predicated region
        $region81: #{tpu_custom_call.1} parent=67 // pred_check
          %p559 = pneg %p174
        $region82: #{tpu_custom_call.1} parent=67 // pred_check_branch
          %561 = sbr.rel (%p559) target = $region84
        $region83: #{tpu_custom_call.1} parent=67 // pred_region
          %562 = dma.done [#allocation12], 256
        $region84: #{tpu_custom_call.1} parent=67 // pred_fallthru
          _
        // Predicated region
        $region85: #{tpu_custom_call.1} parent=67 // pred_check
          %p563 = pneg %p195
        $region86: #{tpu_custom_call.1} parent=67 // pred_check_branch
          %565 = sbr.rel (%p563) target = $region88
        $region87: #{tpu_custom_call.1} parent=67 // pred_region
          %566 = dma.done [#allocation12], 16
        $region88: #{tpu_custom_call.1} parent=67 // pred_fallthru
          _
        // Predicated region
        $region89: #{tpu_custom_call.1} parent=67 // pred_check
          %p567 = pneg %p237
        $region90: #{tpu_custom_call.1} parent=67 // pred_check_branch
          %569 = sbr.rel (%p567) target = $region92
        $region91: #{tpu_custom_call.1} parent=67 // pred_region
          %570 = dma.done [#allocation15], 16
        $region92: #{tpu_custom_call.1} parent=67 // pred_fallthru
          _
        // Predicated region
        $region93: #{tpu_custom_call.1} parent=67 // pred_check
          %p571 = pneg %p258
        $region94: #{tpu_custom_call.1} parent=67 // pred_check_branch
          %573 = sbr.rel (%p571) target = $region96
        $region95: #{tpu_custom_call.1} parent=67 // pred_region
          %574 = dma.done [#allocation15], 256
        $region96: #{tpu_custom_call.1} parent=67 // pred_fallthru
          _
        // Predicated region
        $region97: #{tpu_custom_call.1} parent=67 // pred_check
          %p575 = pneg %p279
        $region98: #{tpu_custom_call.1} parent=67 // pred_check_branch
          %577 = sbr.rel (%p575) target = $region100
        $region99: #{tpu_custom_call.1} parent=67 // pred_region
          %578 = dma.done [#allocation18], 16
        $region100: #{tpu_custom_call.1} parent=67 // pred_fallthru
          _
        %s579 = sand.u32 %s62, 1
        %s580 = scalar_lea.sflag [#allocation6], %s579
        %s581 = sand.u32 %s62, 1
        %s582 = smul.addr %s581, 8
        %s583 = scalar_lea.vmem [#allocation5], %s582
        %p584 = pneg %p75
        %p585 = pneg %p72
        %s586 = sand.u32 %s40, 1
        %s587 = scalar_lea.sflag [#allocation9], %s586
        %s588 = sand.u32 %s88, 1
        %s589 = smul.addr %s588, 8
        %s590 = scalar_lea.vmem [#allocation8], %s589
        %p591 = pneg %p101
        %p592 = pneg %p98
        %s593 = sand.u32 %s40, 1
        %s594 = scalar_lea.sflag [#allocation9], %s593
        %s595 = sand.u32 %s114, 1
        %s596 = smul.addr %s595, 8
        %s597 = scalar_lea.vmem [#allocation10], %s596
        %p598 = pneg %p127
        %p599 = pneg %p124
        %p600 = scmp.lt.s32.totalorder %s44, 1
        %s601 = scalar_select %p600, %s44, 1
        %s602 = scalar_lea.vmem %s3, %s601
        %p603 = pneg %p153
        %p604 = pneg %p150
        %p605 = pneg %p174
        %p606 = pneg %p171
        %p607 = pneg %p195
        %p608 = pneg %p192
        %p609 = pneg %p216
        %p610 = pneg %p213
        %p611 = pneg %p237
        %p612 = pneg %p234
        %p613 = pneg %p258
        %p614 = pneg %p255
        %p615 = pneg %p279
        %p616 = pneg %p276
        %p617 = pneg %p300
        %p618 = pneg %p297
        %p619 = pneg %p321
        %p620 = pneg %p318
        %p621 = pneg %p349
        %p622 = pneg %p346
        %s623 = sand.u32 %s336, 1
        %s624 = scalar_lea.sflag [#allocation7], %s623
        %s625 = sand.u32 %s336, 1
        %s626 = smul.addr %s625, 8
        %s627 = scalar_lea.vmem [#allocation19], %s626
        %p628 = pneg %p377
        %p629 = pneg %p374
        %s630 = sand.u32 %s364, 1
        %s631 = scalar_lea.sflag [#allocation21], %s630
        %s632 = sand.u32 %s364, 1
        %s633 = smul.addr %s632, 32
        %s634 = scalar_lea.vmem [#allocation20], %s633
        %p635 = scmp.lt.s32.totalorder %s44, 1
        %s636 = scalar_select %p635, %s44, 1
        %s637 = scalar_lea.vmem %s3, %s636
        %p639 = scmp.eq.s32.totalorder %s45, 0
        // Predicated region
        $region101: #{tpu_custom_call.1} parent=67 // pred_check
          %p640 = pneg %p639
        $region102: #{tpu_custom_call.1} parent=67 // pred_check_branch
          %642 = sbr.rel (%p640) target = $region104
        $region103: #{tpu_custom_call.1} parent=67 // pred_region
          %v643 = vld [vmem:[%s545] sm:$0xff]
          %v644 = vpack.c.bf16 %v643, %v643
          %v645 = vld [vmem:[%s554] sm:$0xff]
          %v646 = vpack.c.bf16 %v645, %v645
          %v647 = vld [vmem:[%s6] sm:$0xf]
          %v648 = vld [vmem:[%s6 + $0x4] sm:$0xf]
          %v649 = vld [vmem:[%s6 + $0x8] sm:$0xf]
          %v650 = vld [vmem:[%s6 + $0xc] sm:$0xf]
          %v651 = vld [vmem:[#allocation14] sm:$0x1]
          %v653 = vlaneseq
          %v654 = vshrl.u32 %v653, 7
          %v655 = vsub.s32 0, %v654
          %v656 = vrot.slane %v651, %v655
          %v662 = vunpack.c.l.b16 %v647
          %v663 = vunpack.c.l.b16 %v648
          %v664 = vunpack.c.l.b16 %v649
          %v665 = vunpack.c.l.b16 %v650
          %v666 = vpack.c.b16 %v663, %v662
          %v667 = vpack.c.b16 %v665, %v664
          %vm670 = vcmask 261120
          %v672 = vsel %vm670, %v644, 0
          %674 = vmatprep.subr.bf16.mxu0 0
          %675 = vmatpush1.bf16.msra.mxu0 %v666
          %676 = vmatprep.subr.bf16.mxu0 0
          %677 = vmatpush1.bf16.msra.mxu0 %v667
          %678 = vmatprep.subr.bf16.mxu0 0
          %679 = vmatpush1.bf16.msra.mxu0 0
          %680 = vmatprep.subr.bf16.mxu0 0
          %681 = vmatpush1.bf16.msra.mxu0 0
          %682 = vmatprep.subr.bf16.mxu0 0
          %683 = vmatpush1.bf16.msra.mxu0 0
          %684 = vmatprep.subr.bf16.mxu0 0
          %685 = vmatpush1.bf16.msra.mxu0 0
          %686 = vmatprep.subr.bf16.mxu0 0
          %687 = vmatpush1.bf16.msra.mxu0 0
          %688 = vmatprep.subr.bf16.mxu0 0
          %689 = vmatpush1.bf16.msra.mxu0 0
          %690 = vmatprep.subr.bf16.mxu0 0
          %691 = vmatpush1.bf16.msra.mxu0 0
          %692 = vmatprep.subr.bf16.mxu0 0
          %693 = vmatpush1.bf16.msra.mxu0 0
          %694 = vmatprep.subr.bf16.mxu0 0
          %695 = vmatpush1.bf16.msra.mxu0 0
          %696 = vmatprep.subr.bf16.mxu0 0
          %697 = vmatpush1.bf16.msra.mxu0 0
          %698 = vmatprep.subr.bf16.mxu0 0
          %699 = vmatpush1.bf16.msra.mxu0 0
          %700 = vmatprep.subr.bf16.mxu0 0
          %701 = vmatpush1.bf16.msra.mxu0 0
          %702 = vmatprep.subr.bf16.mxu0 0
          %703 = vmatpush1.bf16.msra.mxu0 0
          %704 = vmatprep.subr.bf16.mxu0 0
          %705 = vmatpush1.bf16.msra.mxu0 0
          %706 = vmatprep.mubr.bf16.mxu0 0
          %707 = vmatmul.mubr.bf16.gmra.mrb[0].mxu0 %v672
          %v708 = vpop.f32.mrb[0].mxu0
          %v709 = vadd.f32 %v656, %v708
          %v710 = vpop.f32.mrb[0].mxu0
          %v711 = vpop.f32.mrb[0].mxu0
          %v712 = vpop.f32.mrb[0].mxu0
          %713 = vdwg.mxu0
          %v714 = vld [vmem:[#allocation16] sm:$0xf]
          %v715 = vld [vmem:[#allocation16 + $0x4] sm:$0xf]
          %v716 = vld [vmem:[#allocation16 + $0x8] sm:$0xf]
          %v717 = vld [vmem:[#allocation16 + $0xc] sm:$0xf]
          %v718 = vld [vmem:[#allocation17] sm:$0x1]
          %v720 = vlaneseq
          %v721 = vshrl.u32 %v720, 7
          %v722 = vsub.s32 0, %v721
          %v723 = vrot.slane %v718, %v722
          %v729 = vunpack.c.l.b16 %v714
          %v730 = vunpack.c.l.b16 %v715
          %v731 = vunpack.c.l.b16 %v716
          %v732 = vunpack.c.l.b16 %v717
          %v733 = vpack.c.b16 %v730, %v729
          %v734 = vpack.c.b16 %v732, %v731
          %v738 = vsel %vm670, %v646, 0
          %740 = vmatprep.subr.bf16.mxu0 0
          %741 = vmatpush1.bf16.msra.mxu0 %v733
          %742 = vmatprep.subr.bf16.mxu0 0
          %743 = vmatpush1.bf16.msra.mxu0 %v734
          %744 = vmatprep.subr.bf16.mxu0 0
          %745 = vmatpush1.bf16.msra.mxu0 0
          %746 = vmatprep.subr.bf16.mxu0 0
          %747 = vmatpush1.bf16.msra.mxu0 0
          %748 = vmatprep.subr.bf16.mxu0 0
          %749 = vmatpush1.bf16.msra.mxu0 0
          %750 = vmatprep.subr.bf16.mxu0 0
          %751 = vmatpush1.bf16.msra.mxu0 0
          %752 = vmatprep.subr.bf16.mxu0 0
          %753 = vmatpush1.bf16.msra.mxu0 0
          %754 = vmatprep.subr.bf16.mxu0 0
          %755 = vmatpush1.bf16.msra.mxu0 0
          %756 = vmatprep.subr.bf16.mxu0 0
          %757 = vmatpush1.bf16.msra.mxu0 0
          %758 = vmatprep.subr.bf16.mxu0 0
          %759 = vmatpush1.bf16.msra.mxu0 0
          %760 = vmatprep.subr.bf16.mxu0 0
          %761 = vmatpush1.bf16.msra.mxu0 0
          %762 = vmatprep.subr.bf16.mxu0 0
          %763 = vmatpush1.bf16.msra.mxu0 0
          %764 = vmatprep.subr.bf16.mxu0 0
          %765 = vmatpush1.bf16.msra.mxu0 0
          %766 = vmatprep.subr.bf16.mxu0 0
          %767 = vmatpush1.bf16.msra.mxu0 0
          %768 = vmatprep.subr.bf16.mxu0 0
          %769 = vmatpush1.bf16.msra.mxu0 0
          %770 = vmatprep.subr.bf16.mxu0 0
          %771 = vmatpush1.bf16.msra.mxu0 0
          %772 = vmatprep.mubr.bf16.mxu0 0
          %773 = vmatmul.mubr.bf16.gmra.mrb[0].mxu0 %v738
          %v774 = vpop.f32.mrb[0].mxu0
          %v775 = vadd.f32 %v723, %v774
          %v776 = vpop.f32.mrb[0].mxu0
          %v777 = vpop.f32.mrb[0].mxu0
          %v778 = vpop.f32.mrb[0].mxu0
          %779 = vdwg.mxu0
          %v780 = vpack.c.bf16 %v709, %v709
          %vm781 = vcmask 257024
          %782 = vst.msk [vmem:[#allocation2] sm:$0xf] %vm781, %v780
          %v783 = vpack.c.bf16 %v775, %v775
          %784 = vst.msk [vmem:[#allocation3] sm:$0xf] %vm781, %v783
        $region104: #{tpu_custom_call.1} parent=67 // pred_fallthru
          _
        %v785 = vld [vmem:[%s536] sm:$0xff]
        %v786 = vpack.c.bf16 %v785, %v785
        %v787 = vld [vmem:[#allocation11] sm:$0xf]
        %v788 = vld [vmem:[#allocation11 + $0x4] sm:$0xf]
        %v789 = vld [vmem:[#allocation11 + $0x8] sm:$0xf]
        %v790 = vld [vmem:[#allocation11 + $0xc] sm:$0xf]
        %v791 = vld [vmem:[#allocation13] sm:$0x1]
        %v793 = vlaneseq
        %v794 = vshrl.u32 %v793, 7
        %v795 = vsub.s32 0, %v794
        %v796 = vrot.slane %v791, %v795
        %v802 = vunpack.c.l.b16 %v787
        %v803 = vunpack.c.l.b16 %v788
        %v804 = vunpack.c.l.b16 %v789
        %v805 = vunpack.c.l.b16 %v790
        %v806 = vpack.c.b16 %v803, %v802
        %v807 = vpack.c.b16 %v805, %v804
        %vm810 = vcmask 261120
        %v812 = vsel %vm810, %v786, 0
        %814 = vmatprep.subr.bf16.mxu0 0
        %815 = vmatpush1.bf16.msra.mxu0 %v806
        %816 = vmatprep.subr.bf16.mxu0 0
        %817 = vmatpush1.bf16.msra.mxu0 %v807
        %818 = vmatprep.subr.bf16.mxu0 0
        %819 = vmatpush1.bf16.msra.mxu0 0
        %820 = vmatprep.subr.bf16.mxu0 0
        %821 = vmatpush1.bf16.msra.mxu0 0
        %822 = vmatprep.subr.bf16.mxu0 0
        %823 = vmatpush1.bf16.msra.mxu0 0
        %824 = vmatprep.subr.bf16.mxu0 0
        %825 = vmatpush1.bf16.msra.mxu0 0
        %826 = vmatprep.subr.bf16.mxu0 0
        %827 = vmatpush1.bf16.msra.mxu0 0
        %828 = vmatprep.subr.bf16.mxu0 0
        %829 = vmatpush1.bf16.msra.mxu0 0
        %830 = vmatprep.subr.bf16.mxu0 0
        %831 = vmatpush1.bf16.msra.mxu0 0
        %832 = vmatprep.subr.bf16.mxu0 0
        %833 = vmatpush1.bf16.msra.mxu0 0
        %834 = vmatprep.subr.bf16.mxu0 0
        %835 = vmatpush1.bf16.msra.mxu0 0
        %836 = vmatprep.subr.bf16.mxu0 0
        %837 = vmatpush1.bf16.msra.mxu0 0
        %838 = vmatprep.subr.bf16.mxu0 0
        %839 = vmatpush1.bf16.msra.mxu0 0
        %840 = vmatprep.subr.bf16.mxu0 0
        %841 = vmatpush1.bf16.msra.mxu0 0
        %842 = vmatprep.subr.bf16.mxu0 0
        %843 = vmatpush1.bf16.msra.mxu0 0
        %844 = vmatprep.subr.bf16.mxu0 0
        %845 = vmatpush1.bf16.msra.mxu0 0
        %846 = vmatprep.mubr.bf16.mxu0 0
        %847 = vmatmul.mubr.bf16.gmra.mrb[0].mxu0 %v812
        %v848 = vpop.f32.mrb[0].mxu0
        %v849 = vadd.f32 %v796, %v848
        %v850 = vpop.f32.mrb[0].mxu0
        %v851 = vpop.f32.mrb[0].mxu0
        %v852 = vpop.f32.mrb[0].mxu0
        %853 = vdwg.mxu0
        %v854 = vpack.c.bf16 %v849, %v849
        %v855 = vld [vmem:[#allocation2] sm:$0xf]
        %v856 = vld [vmem:[#allocation3] sm:$0xf]
        %v857 = vld [vmem:[%s637] sm:$0x1]
        %v859 = vlaneseq
        %v860 = vshrl.u32 %v859, 7
        %v861 = vsub.s32 0, %v860
        %v862 = vrot.slane %v857, %v861
        %vm864 = vcmask 64512
        %v866 = vsel %vm864, %v854, 0
        %v869 = vsel %vm864, %v855, 0
        %871 = vmatprep.subr.bf16.mxu0 0
        %872 = vmatpush1.bf16.xpose.msra.mxu0 %v869
        %873 = vmatprep.subr.bf16.mxu0 0
        %874 = vmatpush1.bf16.xpose.msra.mxu0 0
        %875 = vmatprep.subr.bf16.mxu0 0
        %876 = vmatpush1.bf16.xpose.msra.mxu0 0
        %877 = vmatprep.subr.bf16.mxu0 0
        %878 = vmatpush1.bf16.xpose.msra.mxu0 0
        %879 = vmatprep.subr.bf16.mxu0 0
        %880 = vmatpush1.bf16.xpose.msra.mxu0 0
        %881 = vmatprep.subr.bf16.mxu0 0
        %882 = vmatpush1.bf16.xpose.msra.mxu0 0
        %883 = vmatprep.subr.bf16.mxu0 0
        %884 = vmatpush1.bf16.xpose.msra.mxu0 0
        %885 = vmatprep.subr.bf16.mxu0 0
        %886 = vmatpush1.bf16.xpose.msra.mxu0 0
        %887 = vmatprep.subr.bf16.mxu0 0
        %888 = vmatpush1.bf16.xpose.msra.mxu0 0
        %889 = vmatprep.subr.bf16.mxu0 0
        %890 = vmatpush1.bf16.xpose.msra.mxu0 0
        %891 = vmatprep.subr.bf16.mxu0 0
        %892 = vmatpush1.bf16.xpose.msra.mxu0 0
        %893 = vmatprep.subr.bf16.mxu0 0
        %894 = vmatpush1.bf16.xpose.msra.mxu0 0
        %895 = vmatprep.subr.bf16.mxu0 0
        %896 = vmatpush1.bf16.xpose.msra.mxu0 0
        %897 = vmatprep.subr.bf16.mxu0 0
        %898 = vmatpush1.bf16.xpose.msra.mxu0 0
        %899 = vmatprep.subr.bf16.mxu0 0
        %900 = vmatpush1.bf16.xpose.msra.mxu0 0
        %901 = vmatprep.subr.bf16.mxu0 0
        %902 = vmatpush1.bf16.xpose.msra.mxu0 0
        %903 = vmatprep.mubr.bf16.mxu0 0
        %904 = vmatmul.mubr.bf16.gmra.mrb[0].mxu0 %v866
        %v905 = vpop.f32.mrb[0].mxu0
        %v906 = vadd.f32 %v862, %v905
        %v907 = vpop.f32.mrb[0].mxu0
        %v908 = vpop.f32.mrb[0].mxu0
        %v909 = vpop.f32.mrb[0].mxu0
        %910 = vdwg.mxu0
        %v911 = vsel %vm864, %v906, -inf
        %912 = vmax.xlane.f32.xlu0 %v911
        %v913 = vpop.xlane.xlu0 %912
        %v914 = vsub.f32 %v906, %v913
        %v915 = vmul.f32 %v914, 1.442695
        %v916 = vpow.pop %v915
        %v917 = vsel %vm864, %v916, 0.0
        %918 = vadd.xlane.f32.xlu0 %v917
        %v919 = vpop.xlane.xlu0 %918
        %v920 = vpack.c.bf16 %v916, %v916
        %v922 = vsel %vm864, %v920, 0
        %vm924 = vcmask 1043456
        %v926 = vsel %vm924, %v856, 0
        %928 = vmatprep.subr.bf16.mxu0 0
        %929 = vmatpush1.bf16.msra.mxu0 %v926
        %930 = vmatprep.subr.bf16.mxu0 0
        %931 = vmatpush1.bf16.msra.mxu0 0
        %932 = vmatprep.subr.bf16.mxu0 0
        %933 = vmatpush1.bf16.msra.mxu0 0
        %934 = vmatprep.subr.bf16.mxu0 0
        %935 = vmatpush1.bf16.msra.mxu0 0
        %936 = vmatprep.subr.bf16.mxu0 0
        %937 = vmatpush1.bf16.msra.mxu0 0
        %938 = vmatprep.subr.bf16.mxu0 0
        %939 = vmatpush1.bf16.msra.mxu0 0
        %940 = vmatprep.subr.bf16.mxu0 0
        %941 = vmatpush1.bf16.msra.mxu0 0
        %942 = vmatprep.subr.bf16.mxu0 0
        %943 = vmatpush1.bf16.msra.mxu0 0
        %944 = vmatprep.subr.bf16.mxu0 0
        %945 = vmatpush1.bf16.msra.mxu0 0
        %946 = vmatprep.subr.bf16.mxu0 0
        %947 = vmatpush1.bf16.msra.mxu0 0
        %948 = vmatprep.subr.bf16.mxu0 0
        %949 = vmatpush1.bf16.msra.mxu0 0
        %950 = vmatprep.subr.bf16.mxu0 0
        %951 = vmatpush1.bf16.msra.mxu0 0
        %952 = vmatprep.subr.bf16.mxu0 0
        %953 = vmatpush1.bf16.msra.mxu0 0
        %954 = vmatprep.subr.bf16.mxu0 0
        %955 = vmatpush1.bf16.msra.mxu0 0
        %956 = vmatprep.subr.bf16.mxu0 0
        %957 = vmatpush1.bf16.msra.mxu0 0
        %958 = vmatprep.subr.bf16.mxu0 0
        %959 = vmatpush1.bf16.msra.mxu0 0
        %960 = vmatprep.mubr.bf16.mxu0 0
        %961 = vmatmul.mubr.bf16.gmra.mrb[0].mxu0 %v922
        %v962 = vpop.f32.mrb[0].mxu0
        %v963 = vadd.f32 0.0, %v962
        %v964 = vpop.f32.mrb[0].mxu0
        %v965 = vpop.f32.mrb[0].mxu0
        %v966 = vpop.f32.mrb[0].mxu0
        %967 = vdwg.mxu0
        %v968 = vrcp.pop %v919
        %v969 = vmul.f32 %v963, %v968
        %970 = vst.msk [vmem:[#allocation4] sm:$0xff] %vm864, %v969
        %v971 = vrcp.pop %v919
        %v972 = vmul.f32 %v916, %v971
        %973 = vst.msk [vmem:[%s634] sm:$0xff] %vm864, %v972
        %975 = vrot.lane.b32.xlu0 %v854, 120
        %v976 = vpop.permute.xlu0 %975
        %v978 = vunpack.c.l.b16 %v855
        %v979 = vpack.c.b16 %v978, %v978
        %980 = vrot.lane.b32.xlu0 %v979, 120
        %v981 = vpop.permute.xlu0 %980
        %v983 = vsel %vm864, %v976, 0
        %v986 = vsel %vm864, %v981, 0
        %988 = vmatprep.subr.bf16.mxu0 0
        %989 = vmatpush1.bf16.xpose.msra.mxu0 %v986
        %990 = vmatprep.subr.bf16.mxu0 0
        %991 = vmatpush1.bf16.xpose.msra.mxu0 0
        %992 = vmatprep.subr.bf16.mxu0 0
        %993 = vmatpush1.bf16.xpose.msra.mxu0 0
        %994 = vmatprep.subr.bf16.mxu0 0
        %995 = vmatpush1.bf16.xpose.msra.mxu0 0
        %996 = vmatprep.subr.bf16.mxu0 0
        %997 = vmatpush1.bf16.xpose.msra.mxu0 0
        %998 = vmatprep.subr.bf16.mxu0 0
        %999 = vmatpush1.bf16.xpose.msra.mxu0 0
        %1000 = vmatprep.subr.bf16.mxu0 0
        %1001 = vmatpush1.bf16.xpose.msra.mxu0 0
        %1002 = vmatprep.subr.bf16.mxu0 0
        %1003 = vmatpush1.bf16.xpose.msra.mxu0 0
        %1004 = vmatprep.subr.bf16.mxu0 0
        %1005 = vmatpush1.bf16.xpose.msra.mxu0 0
        %1006 = vmatprep.subr.bf16.mxu0 0
        %1007 = vmatpush1.bf16.xpose.msra.mxu0 0
        %1008 = vmatprep.subr.bf16.mxu0 0
        %1009 = vmatpush1.bf16.xpose.msra.mxu0 0
        %1010 = vmatprep.subr.bf16.mxu0 0
        %1011 = vmatpush1.bf16.xpose.msra.mxu0 0
        %1012 = vmatprep.subr.bf16.mxu0 0
        %1013 = vmatpush1.bf16.xpose.msra.mxu0 0
        %1014 = vmatprep.subr.bf16.mxu0 0
        %1015 = vmatpush1.bf16.xpose.msra.mxu0 0
        %1016 = vmatprep.subr.bf16.mxu0 0
        %1017 = vmatpush1.bf16.xpose.msra.mxu0 0
        %1018 = vmatprep.subr.bf16.mxu0 0
        %1019 = vmatpush1.bf16.xpose.msra.mxu0 0
        %1020 = vmatprep.mubr.bf16.mxu0 0
        %1021 = vmatmul.mubr.bf16.gmra.mrb[0].mxu0 %v983
        %v1022 = vpop.f32.mrb[0].mxu0
        %v1023 = vadd.f32 %v862, %v1022
        %v1024 = vpop.f32.mrb[0].mxu0
        %v1025 = vpop.f32.mrb[0].mxu0
        %v1026 = vpop.f32.mrb[0].mxu0
        %1027 = vdwg.mxu0
        %v1028 = vsel %vm864, %v1023, -inf
        %1029 = vmax.xlane.f32.xlu0 %v1028
        %v1030 = vpop.xlane.xlu0 %1029
        %v1031 = vsub.f32 %v1023, %v1030
        %v1032 = vmul.f32 %v1031, 1.442695
        %v1033 = vpow.pop %v1032
        %v1034 = vsel %vm864, %v1033, 0.0
        %1035 = vadd.xlane.f32.xlu0 %v1034
        %v1036 = vpop.xlane.xlu0 %1035
        %v1037 = vpack.c.bf16 %v1033, %v1033
        %v1039 = vunpack.c.l.b16 %v856
        %v1040 = vpack.c.b16 %v1039, %v1039
        %1041 = vrot.lane.b32.xlu0 %v1040, 120
        %v1042 = vpop.permute.xlu0 %1041
        %v1044 = vsel %vm864, %v1037, 0
        %v1047 = vsel %vm924, %v1042, 0
        %1049 = vmatprep.subr.bf16.mxu0 0
        %1050 = vmatpush1.bf16.msra.mxu0 %v1047
        %1051 = vmatprep.subr.bf16.mxu0 0
        %1052 = vmatpush1.bf16.msra.mxu0 0
        %1053 = vmatprep.subr.bf16.mxu0 0
        %1054 = vmatpush1.bf16.msra.mxu0 0
        %1055 = vmatprep.subr.bf16.mxu0 0
        %1056 = vmatpush1.bf16.msra.mxu0 0
        %1057 = vmatprep.subr.bf16.mxu0 0
        %1058 = vmatpush1.bf16.msra.mxu0 0
        %1059 = vmatprep.subr.bf16.mxu0 0
        %1060 = vmatpush1.bf16.msra.mxu0 0
        %1061 = vmatprep.subr.bf16.mxu0 0
        %1062 = vmatpush1.bf16.msra.mxu0 0
        %1063 = vmatprep.subr.bf16.mxu0 0
        %1064 = vmatpush1.bf16.msra.mxu0 0
        %1065 = vmatprep.subr.bf16.mxu0 0
        %1066 = vmatpush1.bf16.msra.mxu0 0
        %1067 = vmatprep.subr.bf16.mxu0 0
        %1068 = vmatpush1.bf16.msra.mxu0 0
        %1069 = vmatprep.subr.bf16.mxu0 0
        %1070 = vmatpush1.bf16.msra.mxu0 0
        %1071 = vmatprep.subr.bf16.mxu0 0
        %1072 = vmatpush1.bf16.msra.mxu0 0
        %1073 = vmatprep.subr.bf16.mxu0 0
        %1074 = vmatpush1.bf16.msra.mxu0 0
        %1075 = vmatprep.subr.bf16.mxu0 0
        %1076 = vmatpush1.bf16.msra.mxu0 0
        %1077 = vmatprep.subr.bf16.mxu0 0
        %1078 = vmatpush1.bf16.msra.mxu0 0
        %1079 = vmatprep.subr.bf16.mxu0 0
        %1080 = vmatpush1.bf16.msra.mxu0 0
        %1081 = vmatprep.mubr.bf16.mxu0 0
        %1082 = vmatmul.mubr.bf16.gmra.mrb[0].mxu0 %v1044
        %v1083 = vpop.f32.mrb[0].mxu0
        %v1084 = vadd.f32 0.0, %v1083
        %v1085 = vpop.f32.mrb[0].mxu0
        %v1086 = vpop.f32.mrb[0].mxu0
        %v1087 = vpop.f32.mrb[0].mxu0
        %1088 = vdwg.mxu0
        %v1089 = vrcp.pop %v1036
        %v1090 = vmul.f32 %v1084, %v1089
        %1092 = vrot.lane.b32.xlu0 %v1090, 8
        %v1093 = vpop.permute.xlu0 %1092
        %vm1095 = vcmask 130112
        %1096 = vst.msk [vmem:[#allocation4] sm:$0xff] %vm1095, %v1093
        %v1097 = vrcp.pop %v1036
        %v1098 = vmul.f32 %v1033, %v1097
        %s1099 = scalar_lea.vmem %s634, 8 [#allocation20]
        %1100 = vst.msk [vmem:[%s1099] sm:$0xff] %vm864, %v1098
        %1101 = vrot.lane.b32.xlu0 %v854, 112
        %v1102 = vpop.permute.xlu0 %1101
        %1103 = vrot.lane.b32.xlu0 %v979, 112
        %v1104 = vpop.permute.xlu0 %1103
        %v1106 = vsel %vm864, %v1102, 0
        %v1109 = vsel %vm864, %v1104, 0
        %1111 = vmatprep.subr.bf16.mxu0 0
        %1112 = vmatpush1.bf16.xpose.msra.mxu0 %v1109
        %1113 = vmatprep.subr.bf16.mxu0 0
        %1114 = vmatpush1.bf16.xpose.msra.mxu0 0
        %1115 = vmatprep.subr.bf16.mxu0 0
        %1116 = vmatpush1.bf16.xpose.msra.mxu0 0
        %1117 = vmatprep.subr.bf16.mxu0 0
        %1118 = vmatpush1.bf16.xpose.msra.mxu0 0
        %1119 = vmatprep.subr.bf16.mxu0 0
        %1120 = vmatpush1.bf16.xpose.msra.mxu0 0
        %1121 = vmatprep.subr.bf16.mxu0 0
        %1122 = vmatpush1.bf16.xpose.msra.mxu0 0
        %1123 = vmatprep.subr.bf16.mxu0 0
        %1124 = vmatpush1.bf16.xpose.msra.mxu0 0
        %1125 = vmatprep.subr.bf16.mxu0 0
        %1126 = vmatpush1.bf16.xpose.msra.mxu0 0
        %1127 = vmatprep.subr.bf16.mxu0 0
        %1128 = vmatpush1.bf16.xpose.msra.mxu0 0
        %1129 = vmatprep.subr.bf16.mxu0 0
        %1130 = vmatpush1.bf16.xpose.msra.mxu0 0
        %1131 = vmatprep.subr.bf16.mxu0 0
        %1132 = vmatpush1.bf16.xpose.msra.mxu0 0
        %1133 = vmatprep.subr.bf16.mxu0 0
        %1134 = vmatpush1.bf16.xpose.msra.mxu0 0
        %1135 = vmatprep.subr.bf16.mxu0 0
        %1136 = vmatpush1.bf16.xpose.msra.mxu0 0
        %1137 = vmatprep.subr.bf16.mxu0 0
        %1138 = vmatpush1.bf16.xpose.msra.mxu0 0
        %1139 = vmatprep.subr.bf16.mxu0 0
        %1140 = vmatpush1.bf16.xpose.msra.mxu0 0
        %1141 = vmatprep.subr.bf16.mxu0 0
        %1142 = vmatpush1.bf16.xpose.msra.mxu0 0
        %1143 = vmatprep.mubr.bf16.mxu0 0
        %1144 = vmatmul.mubr.bf16.gmra.mrb[0].mxu0 %v1106
        %v1145 = vpop.f32.mrb[0].mxu0
        %v1146 = vadd.f32 %v862, %v1145
        %v1147 = vpop.f32.mrb[0].mxu0
        %v1148 = vpop.f32.mrb[0].mxu0
        %v1149 = vpop.f32.mrb[0].mxu0
        %1150 = vdwg.mxu0
        %v1151 = vsel %vm864, %v1146, -inf
        %1152 = vmax.xlane.f32.xlu0 %v1151
        %v1153 = vpop.xlane.xlu0 %1152
        %v1154 = vsub.f32 %v1146, %v1153
        %v1155 = vmul.f32 %v1154, 1.442695
        %v1156 = vpow.pop %v1155
        %v1157 = vsel %vm864, %v1156, 0.0
        %1158 = vadd.xlane.f32.xlu0 %v1157
        %v1159 = vpop.xlane.xlu0 %1158
        %v1160 = vpack.c.bf16 %v1156, %v1156
        %1161 = vrot.lane.b32.xlu0 %v1040, 112
        %v1162 = vpop.permute.xlu0 %1161
        %v1164 = vsel %vm864, %v1160, 0
        %v1167 = vsel %vm924, %v1162, 0
        %1169 = vmatprep.subr.bf16.mxu0 0
        %1170 = vmatpush1.bf16.msra.mxu0 %v1167
        %1171 = vmatprep.subr.bf16.mxu0 0
        %1172 = vmatpush1.bf16.msra.mxu0 0
        %1173 = vmatprep.subr.bf16.mxu0 0
        %1174 = vmatpush1.bf16.msra.mxu0 0
        %1175 = vmatprep.subr.bf16.mxu0 0
        %1176 = vmatpush1.bf16.msra.mxu0 0
        %1177 = vmatprep.subr.bf16.mxu0 0
        %1178 = vmatpush1.bf16.msra.mxu0 0
        %1179 = vmatprep.subr.bf16.mxu0 0
        %1180 = vmatpush1.bf16.msra.mxu0 0
        %1181 = vmatprep.subr.bf16.mxu0 0
        %1182 = vmatpush1.bf16.msra.mxu0 0
        %1183 = vmatprep.subr.bf16.mxu0 0
        %1184 = vmatpush1.bf16.msra.mxu0 0
        %1185 = vmatprep.subr.bf16.mxu0 0
        %1186 = vmatpush1.bf16.msra.mxu0 0
        %1187 = vmatprep.subr.bf16.mxu0 0
        %1188 = vmatpush1.bf16.msra.mxu0 0
        %1189 = vmatprep.subr.bf16.mxu0 0
        %1190 = vmatpush1.bf16.msra.mxu0 0
        %1191 = vmatprep.subr.bf16.mxu0 0
        %1192 = vmatpush1.bf16.msra.mxu0 0
        %1193 = vmatprep.subr.bf16.mxu0 0
        %1194 = vmatpush1.bf16.msra.mxu0 0
        %1195 = vmatprep.subr.bf16.mxu0 0
        %1196 = vmatpush1.bf16.msra.mxu0 0
        %1197 = vmatprep.subr.bf16.mxu0 0
        %1198 = vmatpush1.bf16.msra.mxu0 0
        %1199 = vmatprep.subr.bf16.mxu0 0
        %1200 = vmatpush1.bf16.msra.mxu0 0
        %1201 = vmatprep.mubr.bf16.mxu0 0
        %1202 = vmatmul.mubr.bf16.gmra.mrb[0].mxu0 %v1164
        %v1203 = vpop.f32.mrb[0].mxu0
        %v1204 = vadd.f32 0.0, %v1203
        %v1205 = vpop.f32.mrb[0].mxu0
        %v1206 = vpop.f32.mrb[0].mxu0
        %v1207 = vpop.f32.mrb[0].mxu0
        %1208 = vdwg.mxu0
        %v1209 = vrcp.pop %v1159
        %v1210 = vmul.f32 %v1204, %v1209
        %1212 = vrot.lane.b32.xlu0 %v1210, 16
        %v1213 = vpop.permute.xlu0 %1212
        %vm1215 = vcmask 195712
        %1216 = vst.msk [vmem:[#allocation4] sm:$0xff] %vm1215, %v1213
        %v1217 = vrcp.pop %v1159
        %v1218 = vmul.f32 %v1156, %v1217
        %s1219 = scalar_lea.vmem %s634, 16 [#allocation20]
        %1220 = vst.msk [vmem:[%s1219] sm:$0xff] %vm864, %v1218
        %1221 = vrot.lane.b32.xlu0 %v854, 104
        %v1222 = vpop.permute.xlu0 %1221
        %1223 = vrot.lane.b32.xlu0 %v979, 104
        %v1224 = vpop.permute.xlu0 %1223
        %v1226 = vsel %vm864, %v1222, 0
        %v1229 = vsel %vm864, %v1224, 0
        %1231 = vmatprep.subr.bf16.mxu0 0
        %1232 = vmatpush1.bf16.xpose.msra.mxu0 %v1229
        %1233 = vmatprep.subr.bf16.mxu0 0
        %1234 = vmatpush1.bf16.xpose.msra.mxu0 0
        %1235 = vmatprep.subr.bf16.mxu0 0
        %1236 = vmatpush1.bf16.xpose.msra.mxu0 0
        %1237 = vmatprep.subr.bf16.mxu0 0
        %1238 = vmatpush1.bf16.xpose.msra.mxu0 0
        %1239 = vmatprep.subr.bf16.mxu0 0
        %1240 = vmatpush1.bf16.xpose.msra.mxu0 0
        %1241 = vmatprep.subr.bf16.mxu0 0
        %1242 = vmatpush1.bf16.xpose.msra.mxu0 0
        %1243 = vmatprep.subr.bf16.mxu0 0
        %1244 = vmatpush1.bf16.xpose.msra.mxu0 0
        %1245 = vmatprep.subr.bf16.mxu0 0
        %1246 = vmatpush1.bf16.xpose.msra.mxu0 0
        %1247 = vmatprep.subr.bf16.mxu0 0
        %1248 = vmatpush1.bf16.xpose.msra.mxu0 0
        %1249 = vmatprep.subr.bf16.mxu0 0
        %1250 = vmatpush1.bf16.xpose.msra.mxu0 0
        %1251 = vmatprep.subr.bf16.mxu0 0
        %1252 = vmatpush1.bf16.xpose.msra.mxu0 0
        %1253 = vmatprep.subr.bf16.mxu0 0
        %1254 = vmatpush1.bf16.xpose.msra.mxu0 0
        %1255 = vmatprep.subr.bf16.mxu0 0
        %1256 = vmatpush1.bf16.xpose.msra.mxu0 0
        %1257 = vmatprep.subr.bf16.mxu0 0
        %1258 = vmatpush1.bf16.xpose.msra.mxu0 0
        %1259 = vmatprep.subr.bf16.mxu0 0
        %1260 = vmatpush1.bf16.xpose.msra.mxu0 0
        %1261 = vmatprep.subr.bf16.mxu0 0
        %1262 = vmatpush1.bf16.xpose.msra.mxu0 0
        %1263 = vmatprep.mubr.bf16.mxu0 0
        %1264 = vmatmul.mubr.bf16.gmra.mrb[0].mxu0 %v1226
        %v1265 = vpop.f32.mrb[0].mxu0
        %v1266 = vadd.f32 %v862, %v1265
        %v1267 = vpop.f32.mrb[0].mxu0
        %v1268 = vpop.f32.mrb[0].mxu0
        %v1269 = vpop.f32.mrb[0].mxu0
        %1270 = vdwg.mxu0
        %v1271 = vsel %vm864, %v1266, -inf
        %1272 = vmax.xlane.f32.xlu0 %v1271
        %v1273 = vpop.xlane.xlu0 %1272
        %v1274 = vsub.f32 %v1266, %v1273
        %v1275 = vmul.f32 %v1274, 1.442695
        %v1276 = vpow.pop %v1275
        %v1277 = vsel %vm864, %v1276, 0.0
        %1278 = vadd.xlane.f32.xlu0 %v1277
        %v1279 = vpop.xlane.xlu0 %1278
        %v1280 = vpack.c.bf16 %v1276, %v1276
        %1281 = vrot.lane.b32.xlu0 %v1040, 104
        %v1282 = vpop.permute.xlu0 %1281
        %v1284 = vsel %vm864, %v1280, 0
        %v1287 = vsel %vm924, %v1282, 0
        %1289 = vmatprep.subr.bf16.mxu0 0
        %1290 = vmatpush1.bf16.msra.mxu0 %v1287
        %1291 = vmatprep.subr.bf16.mxu0 0
        %1292 = vmatpush1.bf16.msra.mxu0 0
        %1293 = vmatprep.subr.bf16.mxu0 0
        %1294 = vmatpush1.bf16.msra.mxu0 0
        %1295 = vmatprep.subr.bf16.mxu0 0
        %1296 = vmatpush1.bf16.msra.mxu0 0
        %1297 = vmatprep.subr.bf16.mxu0 0
        %1298 = vmatpush1.bf16.msra.mxu0 0
        %1299 = vmatprep.subr.bf16.mxu0 0
        %1300 = vmatpush1.bf16.msra.mxu0 0
        %1301 = vmatprep.subr.bf16.mxu0 0
        %1302 = vmatpush1.bf16.msra.mxu0 0
        %1303 = vmatprep.subr.bf16.mxu0 0
        %1304 = vmatpush1.bf16.msra.mxu0 0
        %1305 = vmatprep.subr.bf16.mxu0 0
        %1306 = vmatpush1.bf16.msra.mxu0 0
        %1307 = vmatprep.subr.bf16.mxu0 0
        %1308 = vmatpush1.bf16.msra.mxu0 0
        %1309 = vmatprep.subr.bf16.mxu0 0
        %1310 = vmatpush1.bf16.msra.mxu0 0
        %1311 = vmatprep.subr.bf16.mxu0 0
        %1312 = vmatpush1.bf16.msra.mxu0 0
        %1313 = vmatprep.subr.bf16.mxu0 0
        %1314 = vmatpush1.bf16.msra.mxu0 0
        %1315 = vmatprep.subr.bf16.mxu0 0
        %1316 = vmatpush1.bf16.msra.mxu0 0
        %1317 = vmatprep.subr.bf16.mxu0 0
        %1318 = vmatpush1.bf16.msra.mxu0 0
        %1319 = vmatprep.subr.bf16.mxu0 0
        %1320 = vmatpush1.bf16.msra.mxu0 0
        %1321 = vmatprep.mubr.bf16.mxu0 0
        %1322 = vmatmul.mubr.bf16.gmra.mrb[0].mxu0 %v1284
        %v1323 = vpop.f32.mrb[0].mxu0
        %v1324 = vadd.f32 0.0, %v1323
        %v1325 = vpop.f32.mrb[0].mxu0
        %v1326 = vpop.f32.mrb[0].mxu0
        %v1327 = vpop.f32.mrb[0].mxu0
        %1328 = vdwg.mxu0
        %v1329 = vrcp.pop %v1279
        %v1330 = vmul.f32 %v1324, %v1329
        %1332 = vrot.lane.b32.xlu0 %v1330, 24
        %v1333 = vpop.permute.xlu0 %1332
        %vm1335 = vcmask 261312
        %1336 = vst.msk [vmem:[#allocation4] sm:$0xff] %vm1335, %v1333
        %v1337 = vrcp.pop %v1279
        %v1338 = vmul.f32 %v1276, %v1337
        %s1339 = scalar_lea.vmem %s634, 24 [#allocation20]
        %1340 = vst.msk [vmem:[%s1339] sm:$0xff] %vm864, %v1338
        %v1341 = vld [vmem:[#allocation4] sm:$0xff]
        %v1342 = vpack.c.bf16 %v1341, %v1341
        %v1343 = vld [vmem:[%s10] sm:$0xf]
        %v1344 = vld [vmem:[%s10 + $0x4] sm:$0xf]
        %v1345 = vld [vmem:[%s10 + $0x8] sm:$0xf]
        %v1346 = vld [vmem:[%s10 + $0xc] sm:$0xf]
        %v1347 = vld [vmem:[%s11] sm:$0x1]
        %v1349 = vlaneseq
        %v1350 = vshrl.u32 %v1349, 7
        %v1351 = vsub.s32 0, %v1350
        %v1352 = vrot.slane %v1347, %v1351
        %v1358 = vunpack.c.l.b16 %v1343
        %v1359 = vunpack.c.l.b16 %v1344
        %v1360 = vunpack.c.l.b16 %v1345
        %v1361 = vunpack.c.l.b16 %v1346
        %v1362 = vpack.c.b16 %v1359, %v1358
        %v1363 = vpack.c.b16 %v1361, %v1360
        %v1367 = vsel %vm810, %v1342, 0
        %1369 = vmatprep.subr.bf16.mxu0 0
        %1370 = vmatpush1.bf16.msra.mxu0 %v1362
        %1371 = vmatprep.subr.bf16.mxu0 0
        %1372 = vmatpush1.bf16.msra.mxu0 %v1363
        %1373 = vmatprep.subr.bf16.mxu0 0
        %1374 = vmatpush1.bf16.msra.mxu0 0
        %1375 = vmatprep.subr.bf16.mxu0 0
        %1376 = vmatpush1.bf16.msra.mxu0 0
        %1377 = vmatprep.subr.bf16.mxu0 0
        %1378 = vmatpush1.bf16.msra.mxu0 0
        %1379 = vmatprep.subr.bf16.mxu0 0
        %1380 = vmatpush1.bf16.msra.mxu0 0
        %1381 = vmatprep.subr.bf16.mxu0 0
        %1382 = vmatpush1.bf16.msra.mxu0 0
        %1383 = vmatprep.subr.bf16.mxu0 0
        %1384 = vmatpush1.bf16.msra.mxu0 0
        %1385 = vmatprep.subr.bf16.mxu0 0
        %1386 = vmatpush1.bf16.msra.mxu0 0
        %1387 = vmatprep.subr.bf16.mxu0 0
        %1388 = vmatpush1.bf16.msra.mxu0 0
        %1389 = vmatprep.subr.bf16.mxu0 0
        %1390 = vmatpush1.bf16.msra.mxu0 0
        %1391 = vmatprep.subr.bf16.mxu0 0
        %1392 = vmatpush1.bf16.msra.mxu0 0
        %1393 = vmatprep.subr.bf16.mxu0 0
        %1394 = vmatpush1.bf16.msra.mxu0 0
        %1395 = vmatprep.subr.bf16.mxu0 0
        %1396 = vmatpush1.bf16.msra.mxu0 0
        %1397 = vmatprep.subr.bf16.mxu0 0
        %1398 = vmatpush1.bf16.msra.mxu0 0
        %1399 = vmatprep.subr.bf16.mxu0 0
        %1400 = vmatpush1.bf16.msra.mxu0 0
        %1401 = vmatprep.mubr.bf16.mxu0 0
        %1402 = vmatmul.mubr.bf16.gmra.mrb[0].mxu0 %v1367
        %v1403 = vpop.f32.mrb[0].mxu0
        %v1404 = vadd.f32 %v1352, %v1403
        %v1405 = vpop.f32.mrb[0].mxu0
        %v1406 = vpop.f32.mrb[0].mxu0
        %v1407 = vpop.f32.mrb[0].mxu0
        %1408 = vdwg.mxu0
        %1409 = vst.msk [vmem:[%s627] sm:$0xff] %vm810, %v1404
        %s1410 = sand.u32 %s336, 1
        %s1411 = scalar_lea.sflag [#allocation7], %s1410
        %s1412 = sand.u32 %s336, 1
        %s1413 = smul.addr %s1412, 8
        %s1414 = scalar_lea.vmem [#allocation19], %s1413
        %s1415 = sand.u32 %s364, 1
        %s1416 = scalar_lea.sflag [#allocation21], %s1415
        %s1417 = sand.u32 %s364, 1
        %s1418 = smul.addr %s1417, 32
        %s1419 = scalar_lea.vmem [#allocation20], %s1418
        // Predicated region
        $region105: #{tpu_custom_call.1} parent=67 // pred_check
          %p1420 = pneg %p346
        $region106: #{tpu_custom_call.1} parent=67 // pred_check_branch
          %1422 = sbr.rel (%p1420) target = $region108
        $region107: #{tpu_custom_call.1} parent=67 // pred_region
          %s1424 = ssub.s32 128, 128
          %1425 = vsyncadd %s1411, %s1424
          %s1426 = sadd.s32 %s45, %s44
          %s1427 = smul.addr %s1426, 128
          %s1428 = scalar_lea.hbm %s12, %s1427
          %s1430 = sshll.u32 %s1414, 4
          %s1431 = int_to_ptr.vmem [resolvable:$true] %s1430
          %1433 = dma.vmem_to_hbm [thread:$0]  %s1431, 128, %s1428, %s1411
        $region108: #{tpu_custom_call.1} parent=67 // pred_fallthru
          _
        // Predicated region
        $region109: #{tpu_custom_call.1} parent=67 // pred_check
          %p1434 = pneg %p374
        $region110: #{tpu_custom_call.1} parent=67 // pred_check_branch
          %1436 = sbr.rel (%p1434) target = $region112
        $region111: #{tpu_custom_call.1} parent=67 // pred_region
          %s1438 = ssub.s32 512, 512
          %1439 = vsyncadd %s1416, %s1438
          %s1440 = smul.addr %s44, 4
          %s1441 = sadd.s32 %s45, %s1440
          %s1442 = smul.addr %s1441, 128
          %s1443 = scalar_lea.hbm %s13, %s1442
          %s1444 = sshll.u32 %s1419, 4
          %s1445 = int_to_ptr.vmem [resolvable:$true] %s1444
          %1450 = dma.vmem_to_hbm [thread:$0]  %s1445, 512, %s1443, %s1416, 128, 128, 8
        $region112: #{tpu_custom_call.1} parent=67 // pred_fallthru
          _
      $region68: #{tpu_custom_call.1} parent=5 // pred_fallthru
        _
      %p1451 = scmp.le.s32.totalorder 2, %s35
      // Predicated region
      $region113: #{tpu_custom_call.1} parent=5 // pred_check
        %p1452 = pneg %p1451
      $region114: #{tpu_custom_call.1} parent=5 // pred_check_branch
        %1454 = sbr.rel (%p1452) target = $region116
      $region115: #{tpu_custom_call.1} parent=5 // pred_region
        %s1455 = ssub.s32 %s35, 2
        // Predicated region
        $region117: #{tpu_custom_call.1} parent=115 // pred_check
          %p1456 = pneg %p352
        $region118: #{tpu_custom_call.1} parent=115 // pred_check_branch
          %1458 = sbr.rel (%p1456) target = $region120
        $region119: #{tpu_custom_call.1} parent=115 // pred_region
          %s1459 = sand.u32 %s337, 1
          %s1460 = scalar_lea.sflag [#allocation7], %s1459
          %s1461 = sand.u32 %s337, 1
          %s1462 = smul.addr %s1461, 8
          %s1463 = scalar_lea.vmem [#allocation19], %s1462
          %1464 = dma.done %s1460, 128
        $region120: #{tpu_custom_call.1} parent=115 // pred_fallthru
          _
        // Predicated region
        $region121: #{tpu_custom_call.1} parent=115 // pred_check
          %p1465 = pneg %p380
        $region122: #{tpu_custom_call.1} parent=115 // pred_check_branch
          %1467 = sbr.rel (%p1465) target = $region124
        $region123: #{tpu_custom_call.1} parent=115 // pred_region
          %s1468 = sand.u32 %s365, 1
          %s1469 = scalar_lea.sflag [#allocation21], %s1468
          %s1470 = sand.u32 %s365, 1
          %s1471 = smul.addr %s1470, 32
          %s1472 = scalar_lea.vmem [#allocation20], %s1471
          %1473 = dma.done %s1469, 512
        $region124: #{tpu_custom_call.1} parent=115 // pred_fallthru
          _
      $region116: #{tpu_custom_call.1} parent=5 // pred_fallthru
        _
    $region6: #{tpu_custom_call.1} parent=1 // loop_footer
      %s39 = sadd.s32 1, %s35
    $region7: #{tpu_custom_call.1} parent=1 // loop_footer_branch
      %34 = sbr.rel target = $region3
    $region8: #{tpu_custom_call.1} parent=1 // loop_exit
      _
    %1474 = vsyncpa [#allocation6], 1
    %s1475 = scalar_lea.sflag [#allocation6], 1
    %1476 = vsyncpa %s1475, 1
    %1477 = vsyncpa [#allocation9], 1
    %s1478 = scalar_lea.sflag [#allocation9], 1
    %1479 = vsyncpa %s1478, 1
    %1480 = vsyncpa [#allocation12], 1
    %1481 = vsyncpa [#allocation15], 1
    %1482 = vsyncpa [#allocation18], 1
    %1483 = vsyncpa [#allocation7], 1
    %s1484 = scalar_lea.sflag [#allocation7], 1
    %1485 = vsyncpa %s1484, 1
    %1486 = vsyncpa [#allocation21], 1
    %s1487 = scalar_lea.sflag [#allocation21], 1
    %1488 = vsyncpa %s1487, 1

</llo_original>
